<compile_context>
chip_gen: v5e
topology: v5e:2x2
jax: 0.10.0
libtpu: 0.0.40
codegen_flags: <defaults>
</compile_context>

<pallas_src>
from functools import partial

import jax
import jax.numpy as jnp
from jax.experimental import pallas as pl
from jax.experimental.pallas import tpu as pltpu


# ----------------------------------------------------------------------------
# Pallas kernel: stride-1 'SAME' conv, one K=9*Cin matmul per row band,
# optionally fused with a 1x1 shortcut conv on the raw (pre-activation) input.
# ----------------------------------------------------------------------------
def _conv_kernel(*refs, rows, halo, W, ntaps, pre_relu, has_sc):
    """One (image, row-band) grid step.

    refs (has_sc=False): x_ref, w_ref, b_ref, o_ref
    refs (has_sc=True) : x_ref, w_ref, b_ref, wsc_ref, bsc_ref, o_ref, osc_ref

    x_ref   : (P, Cin)            bf16 flattened padded image (resident per n)
    w_ref   : (ntaps*Cin, Cout)   bf16 flattened conv weights (resident)
    b_ref   : (1, Cout)           f32 bias (resident)
    wsc_ref : (Cin, Csc)          bf16 1x1 shortcut weights (resident)
    bsc_ref : (1, Csc)            f32 shortcut bias (resident)
    o_ref   : (rows, Cout)        bf16 main output band
    osc_ref : (rows, Csc)         bf16 shortcut output band
    """
    if has_sc:
        x_ref, w_ref, b_ref, wsc_ref, bsc_ref, o_ref, osc_ref = refs
    else:
        x_ref, w_ref, b_ref, o_ref = refs

    hb = pl.program_id(1)
    base = pl.multiple_of(hb * rows, rows)      # rows % 16 == 0 -> aligned start

    # One banded load (with halo) per grid step, kept in bf16.  ReLU once.
    raw = x_ref[pl.ds(base, rows + halo), :]                 # (rows+halo, Cin)
    v = jnp.maximum(raw, 0) if pre_relu else raw

    if ntaps == 9:
        # Edge-validity masks from an in-kernel iota over *source* positions:
        # for dx==0 taps the wrapped reads sit at source index % W == 0, for
        # dx==2 taps at source index % W == 1 (band start is a multiple of W).
        col = jax.lax.broadcasted_iota(jnp.int32, (rows + halo, 1), 0)
        colw = (col & (W - 1)) if (W & (W - 1)) == 0 else (col % W)
        zero = jnp.zeros((), v.dtype)
        v_l = jnp.where(colw == 0, zero, v)      # used by all dx == 0 taps
        v_r = jnp.where(colw == 1, zero, v)      # used by all dx == 2 taps

        pieces = []
        for dy in range(3):
            for dx in range(3):
                src = v_l if dx == 0 else (v_r if dx == 2 else v)
                off = dy * W + dx
                pieces.append(src[off:off + rows, :])        # static slice
        lhs = jnp.concatenate(pieces, axis=-1)               # (rows, 9*Cin)
    else:
        lhs = v[:rows, :]                                    # 1x1 conv

    acc = jnp.dot(lhs, w_ref[...], preferred_element_type=jnp.float32)
    o_ref[...] = (acc + b_ref[...]).astype(o_ref.dtype)

    if has_sc:
        # 1x1 shortcut conv on the raw (un-activated) centre pixels.
        ctr = raw[W + 1:W + 1 + rows, :]
        acc2 = jnp.dot(ctr, wsc_ref[...], preferred_element_type=jnp.float32)
        osc_ref[...] = (acc2 + bsc_ref[...]).astype(osc_ref.dtype)


def conv_block(x, w, b=None, wsc=None, bsc=None, pre_relu=False):
    """Stride-1 'SAME' conv (3x3 or 1x1), optionally fused with a 1x1 shortcut
    conv that reads the same (pre-activation) input.

    x   : (N, H, W, Cin)
    w   : (kh, kw, Cin, Cout) f32
    b   : (Cout,) f32 or None
    wsc : (1, 1, Cin, Csc) / (Cin, Csc) f32 or None -- fused 1x1 on raw x
    bsc : (Csc,) f32 or None
    Returns y (N,H,W,Cout) bf16  [, ysc (N,H,W,Csc) bf16 if wsc is not None].
    """
    N, H, W, Cin = x.shape
    kh, kw, _, Cout = w.shape
    ntaps = kh * kw
    HW = H * W
    has_sc = wsc is not None
    assert ntaps in (1, 9), "model only uses 3x3 / 1x1 convolutions"
    assert not (has_sc and ntaps == 1), "shortcut fusion only with 3x3 convs"

    xb = x.astype(jnp.bfloat16)
    if ntaps == 9:
        # Single host-side pad: W+1 zeros in front (top padded row + 1 column)
        # and W+9 behind, so every tap offset / halo slice stays in bounds.
        xflat = jnp.pad(xb.reshape(N, HW, Cin), ((0, 0), (W + 1, W + 9), (0, 0)))
        P = HW + 2 * W + 10
        halo = 2 * W + 8
    else:
        xflat = xb.reshape(N, HW, Cin)
        P, halo = HW, 0

    # Row-band size: biggest band <= 2048 rows (safe for v7x's 64 MiB VMEM).
    tile_h = H
    while tile_h * W > 2048 and tile_h % 2 == 0:
        tile_h //= 2
    rows = tile_h * W
    nbands = H // tile_h
    assert H % tile_h == 0 and rows % W == 0
    assert nbands == 1 or rows % 16 == 0, "banded path needs 16-aligned bands"

    wflat = w.reshape(ntaps * Cin, Cout).astype(jnp.bfloat16)
    b2 = (jnp.zeros((Cout,), jnp.float32) if b is None
          else b.astype(jnp.float32)).reshape(1, Cout)

    args = [xflat, wflat, b2]
    in_specs = [
        pl.BlockSpec((None, P, Cin), lambda n, hb: (n, 0, 0)),      # resident per image
        pl.BlockSpec((ntaps * Cin, Cout), lambda n, hb: (0, 0)),    # resident
        pl.BlockSpec((1, Cout), lambda n, hb: (0, 0)),              # resident
    ]
    out_shape = [jax.ShapeDtypeStruct((N, HW, Cout), jnp.bfloat16)]
    out_specs = [pl.BlockSpec((None, rows, Cout), lambda n, hb: (n, hb, 0))]

    if has_sc:
        wscr = wsc.reshape(Cin, -1).astype(jnp.bfloat16)
        Csc = wscr.shape[-1]
        bsc2 = (jnp.zeros((Csc,), jnp.float32) if bsc is None
                else bsc.astype(jnp.float32)).reshape(1, Csc)
        args += [wscr, bsc2]
        in_specs += [pl.BlockSpec((Cin, Csc), lambda n, hb: (0, 0)),
                     pl.BlockSpec((1, Csc), lambda n, hb: (0, 0))]
        out_shape.append(jax.ShapeDtypeStruct((N, HW, Csc), jnp.bfloat16))
        out_specs.append(pl.BlockSpec((None, rows, Csc), lambda n, hb: (n, hb, 0)))

    kernel = partial(_conv_kernel, rows=rows, halo=halo, W=W, ntaps=ntaps,
                     pre_relu=pre_relu, has_sc=has_sc)

    outs = pl.pallas_call(
        kernel,
        out_shape=tuple(out_shape),
        grid=(N, nbands),
        in_specs=in_specs,
        out_specs=tuple(out_specs),
        compiler_params=pltpu.CompilerParams(
            dimension_semantics=("parallel", "arbitrary"),
            vmem_limit_bytes=32 * 1024 * 1024),
    )(*args)

    if has_sc:
        y, ysc = outs
        return y.reshape(N, H, W, Cout), ysc.reshape(N, H, W, -1)
    (y,) = outs
    return y.reshape(N, H, W, Cout)


# ----------------------------------------------------------------------------
# Plain-JAX glue (pooling / upsample / concat / attention bmm / tiny heads)
# ----------------------------------------------------------------------------
def avg_pool2(x):
    N, H, W, C = x.shape
    return x.reshape(N, H // 2, 2, W // 2, 2, C).mean(axis=(2, 4))


def max_pool2(x):
    N, H, W, C = x.shape
    return x.reshape(N, H // 2, 2, W // 2, 2, C).max(axis=(2, 4))


def up_nearest2(x):
    return jnp.repeat(jnp.repeat(x, 2, axis=1), 2, axis=2)


def bottleneck_head(h, w, b):
    """torch.sum(relu(h), [2,3]) followed by SNLinear(16*ch -> 1). Plain JAX."""
    s = jnp.sum(jnp.maximum(h.astype(jnp.float32), 0.0), axis=(1, 2))   # (N, C)
    return s @ w.astype(jnp.float32).T + b.astype(jnp.float32)          # (N, 1)


def last_conv_1x1(h, w, b):
    """Final nn.Conv2d(ch, 1, kernel_size=1): Cout=1, plain JAX (overhead-bound)."""
    N, H, W_, C = h.shape
    y = jnp.einsum('nhwc,co->nhwo', h.astype(jnp.float32),
                   w.reshape(C, -1).astype(jnp.float32))
    return y + b.astype(jnp.float32)


def dblock(x, p):
    # layers.DBlock, wide=True, downsample=AvgPool2d(2)
    if p['preact']:
        # conv1(relu(x)) and conv_sc(x) share the input -> single fused call.
        h1, sc = conv_block(x, p['conv1']['w'], p['conv1']['b'],
                            p['conv_sc']['w'], p['conv_sc']['b'], pre_relu=True)
        h = conv_block(h1, p['conv2']['w'], p['conv2']['b'], pre_relu=True)
        return avg_pool2(h) + avg_pool2(sc)
    # index 0: no pre-activation, shortcut conv applied after the downsample.
    h1 = conv_block(x, p['conv1']['w'], p['conv1']['b'], pre_relu=False)
    h = conv_block(h1, p['conv2']['w'], p['conv2']['b'], pre_relu=True)
    h = avg_pool2(h)
    sc = conv_block(avg_pool2(x), p['conv_sc']['w'], p['conv_sc']['b'])
    return h + sc


def gblock2(x, p):
    # layers.GBlock2, nearest x2 upsample, skip_connection=True
    xu = up_nearest2(x)                 # relu(up(x)) == up(relu(x)) for nearest
    h1, sc = conv_block(xu, p['conv1']['w'], p['conv1']['b'],
                        p['conv_sc']['w'], p['conv_sc']['b'], pre_relu=True)
    h = conv_block(h1, p['conv2']['w'], p['conv2']['b'], pre_relu=True)
    return h + sc


def attention_block(x, p):
    # BigGAN layers.Attention (gamma initialised to 0, like the reference).
    # theta/phi/g 1x1 projections fused into one conv via Cout-concat weights.
    # TODO(synk): the O(HW^2) bmm/softmax stays in plain JAX.
    N, H, W, C = x.shape
    c8 = p['theta']['w'].shape[-1]
    c2 = p['g']['w'].shape[-1]
    w_cat = jnp.concatenate([p['theta']['w'], p['phi']['w'], p['g']['w']], axis=-1)
    proj = conv_block(x, w_cat, None)                       # (N,H,W, 2*c8 + c2)
    theta = proj[..., :c8].reshape(N, H * W, c8).astype(jnp.float32)
    phi = max_pool2(proj[..., c8:2 * c8]).reshape(N, (H * W) // 4, c8).astype(jnp.float32)
    g = max_pool2(proj[..., 2 * c8:]).reshape(N, (H * W) // 4, c2).astype(jnp.float32)
    beta = jax.nn.softmax(jnp.einsum('nqc,nkc->nqk', theta, phi), axis=-1)
    o = jnp.einsum('nqk,nkc->nqc', beta, g).reshape(N, H, W, c2)
    o = conv_block(o.astype(jnp.bfloat16), p['o']['w'], None)
    return p['gamma'].astype(x.dtype) * o + x


# ----------------------------------------------------------------------------
# Deterministic parameter construction (synthetic; mirrors module shapes + SN)
# ----------------------------------------------------------------------------
def _l2normalize(v, eps=1e-12):
    return v / jnp.maximum(jnp.linalg.norm(v), eps)


def _spectral_norm(w, u):
    # One BigGAN power iteration (num_svs=1, num_itrs=1): returns W / sigma.
    w_mat = w.reshape(w.shape[0], -1)
    v = _l2normalize(u @ w_mat)
    u_new = _l2normalize(v @ w_mat.T)
    sigma = (v @ w_mat.T @ u_new.T)[0, 0]
    return w / sigma


def _make_snconv(key, cin, cout, k, bias=True, scale=0.05):
    kw_, ku, kb = jax.random.split(key, 3)
    w = jax.random.normal(kw_, (cout, cin, k, k), jnp.float32) * scale
    u = jax.random.normal(ku, (1, cout), jnp.float32)
    w = _spectral_norm(w, u)
    w = jnp.transpose(w, (2, 3, 1, 0))                  # -> (kh, kw, Cin, Cout)
    b = jax.random.normal(kb, (cout,), jnp.float32) * 0.01 if bias else None
    return {'w': w, 'b': b}


def _make_snlinear(key, cin, cout, scale=0.05):
    kw_, ku, kb = jax.random.split(key, 3)
    w = jax.random.normal(kw_, (cout, cin), jnp.float32) * scale
    u = jax.random.normal(ku, (1, cout), jnp.float32)
    w = _spectral_norm(w, u)
    b = jax.random.normal(kb, (cout,), jnp.float32) * 0.01
    return {'w': w, 'b': b}


def d_unet_arch_128(ch, attention='64'):
    attn = {2 ** i: (2 ** i) in [int(a) for a in attention.split('_')]
            for i in range(2, 11)}
    return {
        'in_channels': [3] + [ch * m for m in [1, 2, 4, 8, 16, 8 * 2, 4 * 2, 2 * 2, 1 * 2, 1]],
        'out_channels': [ch * m for m in [1, 2, 4, 8, 16, 8, 4, 2, 1, 1]],
        'downsample': [True] * 5 + [False] * 5,
        'upsample': [False] * 5 + [True] * 5,
        'resolution': [64, 32, 16, 8, 4, 8, 16, 32, 64, 128],
        'attention': attn,
    }


def init_unet_discriminator(key, ch=8, attention='64'):
    arch = d_unet_arch_128(ch, attention)
    keys = iter(jax.random.split(key, 128))
    blocks = []
    for idx in range(len(arch['out_channels'])):
        cin, cout = arch['in_channels'][idx], arch['out_channels'][idx]
        blk = {
            'type': 'D' if arch['downsample'][idx] else 'G',
            'preact': idx > 0,
            'conv1': _make_snconv(next(keys), cin, cout, 3),
            'conv2': _make_snconv(next(keys), cout, cout, 3),
            'conv_sc': _make_snconv(next(keys), cin, cout, 1),
        }
        if arch['attention'][arch['resolution'][idx]] and idx < 5:
            blk['attn'] = {
                'theta': _make_snconv(next(keys), cout, cout // 8, 1, bias=False),
                'phi': _make_snconv(next(keys), cout, cout // 8, 1, bias=False),
                'g': _make_snconv(next(keys), cout, cout // 2, 1, bias=False),
                'o': _make_snconv(next(keys), cout // 2, cout, 1, bias=False),
                'gamma': jnp.float32(0.0),
            }
        blocks.append(blk)
    k1, k2, k3 = jax.random.split(next(keys), 3)
    last = {'w': jax.random.normal(k1, (1, 1, ch, 1), jnp.float32) * 0.05,
            'b': jax.random.normal(k2, (1,), jnp.float32) * 0.01}
    linear_middle = _make_snlinear(k3, 16 * ch, 1)
    return {'blocks': blocks, 'last': last, 'linear_middle': linear_middle}


# ----------------------------------------------------------------------------
# Full forward pass (resolution = 128, unconditional = True)
# ----------------------------------------------------------------------------
def unet_discriminator_forward(params, x_nchw):
    x = jnp.transpose(x_nchw, (0, 2, 3, 1)).astype(jnp.bfloat16)   # NCHW -> NHWC
    save_features = [0, 1, 2, 3, 4]
    h = x
    residual_features = [x]
    bottleneck_out = None
    for index, p in enumerate(params['blocks']):
        if index == 6:
            h = jnp.concatenate([h, residual_features[4]], axis=-1)
        elif index == 7:
            h = jnp.concatenate([h, residual_features[3]], axis=-1)
        elif index == 8:
            h = jnp.concatenate([h, residual_features[2]], axis=-1)
        elif index == 9:
            h = jnp.concatenate([h, residual_features[1]], axis=-1)
        h = dblock(h, p) if p['type'] == 'D' else gblock2(h, p)
        if 'attn' in p:
            h = attention_block(h, p['attn'])
        if index in save_features[:-1]:
            residual_features.append(h)
        if index == save_features[-1]:
            bottleneck_out = bottleneck_head(
                h, params['linear_middle']['w'], params['linear_middle']['b'])
    out = last_conv_1x1(h, params['last']['w'], params['last']['b'])
    # unconditional=True -> projection term is 0
    out = jnp.transpose(out, (0, 3, 1, 2)).astype(jnp.float32)    # (N,1,128,128)
    return out, bottleneck_out


# ----------------------------------------------------------------------------
def _ref_conv(x, w, b=None, pre_relu=False):
    """XLA reference for the Pallas conv, matched to bf16 inputs / f32 accum."""
    xb = x.astype(jnp.bfloat16).astype(jnp.float32)
    if pre_relu:
        xb = jnp.maximum(xb, 0.0)
    out = jax.lax.conv_general_dilated(
        xb.astype(jnp.bfloat16), w.astype(jnp.bfloat16), (1, 1), 'SAME',
        dimension_numbers=('NHWC', 'HWIO', 'NHWC'),
        preferred_element_type=jnp.float32)
    if b is not None:
        out = out + b
    return out


if __name__ == "__main__":
    root = jax.random.PRNGKey(0)
    kp, kx, kt = jax.random.split(root, 3)

    # --- numerical self-checks of the Pallas conv kernel against XLA conv ----
    # 1) 3x3 conv, single band (edge masks + pre-activation ReLU + K-concat).
    xt = jax.random.normal(kt, (2, 16, 16, 8), jnp.float32)
    wt = jax.random.normal(jax.random.fold_in(kt, 1), (3, 3, 8, 4), jnp.float32) * 0.1
    bt = jax.random.normal(jax.random.fold_in(kt, 2), (4,), jnp.float32) * 0.1
    got = conv_block(xt, wt, bt, pre_relu=True).astype(jnp.float32)
    ref = _ref_conv(xt, wt, bt, pre_relu=True)
    assert jnp.allclose(got, ref, atol=3e-2, rtol=3e-2), "3x3 conv self-check failed"

    # 2) 3x3 conv with multiple row bands (banded dynamic base).
    xt2 = jax.random.normal(jax.random.fold_in(kt, 3), (2, 128, 32, 8), jnp.float32)
    wt2 = jax.random.normal(jax.random.fold_in(kt, 4), (3, 3, 8, 16), jnp.float32) * 0.1
    bt2 = jax.random.normal(jax.random.fold_in(kt, 5), (16,), jnp.float32) * 0.1
    got2 = conv_block(xt2, wt2, bt2, pre_relu=False).astype(jnp.float32)
    ref2 = _ref_conv(xt2, wt2, bt2, pre_relu=False)
    assert jnp.allclose(got2, ref2, atol=3e-2, rtol=3e-2), "banded conv self-check failed"

    # 3) 1x1 conv path.
    wt3 = jax.random.normal(jax.random.fold_in(kt, 6), (1, 1, 8, 4), jnp.float32) * 0.1
    got3 = conv_block(xt, wt3, None, pre_relu=False).astype(jnp.float32)
    ref3 = _ref_conv(xt, wt3, None, pre_relu=False)
    assert jnp.allclose(got3, ref3, atol=3e-2, rtol=3e-2), "1x1 conv self-check failed"

    # 4) fused 3x3 + 1x1 shortcut (dual-output) path.
    wsc_t = jax.random.normal(jax.random.fold_in(kt, 7), (1, 1, 8, 4), jnp.float32) * 0.1
    bsc_t = jax.random.normal(jax.random.fold_in(kt, 8), (4,), jnp.float32) * 0.1
    got_h, got_sc = conv_block(xt, wt, bt, wsc_t, bsc_t, pre_relu=True)
    ref_h = _ref_conv(xt, wt, bt, pre_relu=True)
    ref_sc = _ref_conv(xt, wsc_t, bsc_t, pre_relu=False)
    assert jnp.allclose(got_h.astype(jnp.float32), ref_h, atol=3e-2, rtol=3e-2), \
        "fused main conv self-check failed"
    assert jnp.allclose(got_sc.astype(jnp.float32), ref_sc, atol=3e-2, rtol=3e-2), \
        "fused shortcut conv self-check failed"

    # --- full Unet_Discriminator forward ------------------------------------
    ch = 8   # D_ch kept small for the demo; architecture otherwise identical.
    params = init_unet_discriminator(kp, ch=ch)
    x = jax.random.normal(kx, (2, 3, 128, 128), jnp.float32)      # NCHW, like PyTorch

    fwd = jax.jit(lambda inp: unet_discriminator_forward(params, inp))
    out, bottleneck_out = fwd(x)
    out, bottleneck_out = jax.block_until_ready((out, bottleneck_out))

    assert out.shape == (2, 1, 128, 128) and out.dtype == jnp.float32
    assert bottleneck_out.shape == (2, 1)
    assert bool(jnp.all(jnp.isfinite(out))) and bool(jnp.all(jnp.isfinite(bottleneck_out)))
    print("KERNEL_OK")
</pallas_src>

<mosaic_0001>
module attributes {stable_mosaic.version = 11 : i64} {
  func.func @_conv_kernel(%arg0: i32, %arg1: i32, %arg2: memref<1x298x8xbf16, #tpu.memory_space<vmem>>, %arg3: memref<72x4xbf16, #tpu.memory_space<vmem>>, %arg4: memref<1x4xf32, #tpu.memory_space<vmem>>, %arg5: memref<1x256x4xbf16, #tpu.memory_space<vmem>>) attributes {dimension_semantics = [#tpu.dimension_semantics<parallel>, #tpu.dimension_semantics<arbitrary>], iteration_bounds = array<i64: 2, 1>, scalar_prefetch = 0 : i64, scratch_operands = 0 : i64, tpu.core_type = #tpu.core_type<tc>, window_params = [{transform_indices = @transform_0, window_bounds = array<i64: 1, 298, 8>}, {pipeline_mode = #tpu.pipeline_mode<synchronous>, transform_indices = @transform_1, window_bounds = array<i64: 72, 4>}, {pipeline_mode = #tpu.pipeline_mode<synchronous>, transform_indices = @transform_2, window_bounds = array<i64: 1, 4>}, {transform_indices = @transform_3, window_bounds = array<i64: 1, 256, 4>}]} {
    %c256_i32 = arith.constant 256 : i32
    %0 = arith.muli %arg1, %c256_i32 : i32
    %1 = tpu.assume_multiple %0, 256 : i32
    %c0 = arith.constant 0 : index
    %2 = arith.index_cast %1 : i32 to index
    %c0_0 = arith.constant 0 : index
    %3 = vector.load %arg2[%c0, %2, %c0_0] : memref<1x298x8xbf16, #tpu.memory_space<vmem>>, vector<1x296x8xbf16>
    %4 = vector.shape_cast %3 : vector<1x296x8xbf16> to vector<296x8xbf16>
    %cst = arith.constant 0.000000e+00 : bf16
    %5 = vector.broadcast %cst : bf16 to vector<296x8xbf16>
    %6 = arith.maximumf %4, %5 : vector<296x8xbf16>
    %7 = tpu.iota {dimensions = array<i32: 0>} : vector<296x1xi32>
    %c15_i32 = arith.constant 15 : i32
    %8 = vector.broadcast %c15_i32 : i32 to vector<296x1xi32>
    %9 = arith.andi %7, %8 : vector<296x1xi32>
    %c0_i32 = arith.constant 0 : i32
    %10 = vector.broadcast %c0_i32 : i32 to vector<296x1xi32>
    %11 = arith.cmpi eq, %9, %10 : vector<296x1xi32>
    %cst_1 = arith.constant 0.000000e+00 : bf16
    %12 = vector.shape_cast %11 : vector<296x1xi1> to vector<296x1xi1>
    %13 = vector.broadcast %12 : vector<296x1xi1> to vector<296x8xi1>
    %14 = vector.broadcast %cst_1 : bf16 to vector<296x8xbf16>
    %15 = arith.select %13, %14, %6 : vector<296x8xi1>, vector<296x8xbf16>
    %c1_i32 = arith.constant 1 : i32
    %16 = vector.broadcast %c1_i32 : i32 to vector<296x1xi32>
    %17 = arith.cmpi eq, %9, %16 : vector<296x1xi32>
    %cst_2 = arith.constant 0.000000e+00 : bf16
    %18 = vector.shape_cast %17 : vector<296x1xi1> to vector<296x1xi1>
    %19 = vector.broadcast %18 : vector<296x1xi1> to vector<296x8xi1>
    %20 = vector.broadcast %cst_2 : bf16 to vector<296x8xbf16>
    %21 = arith.select %19, %20, %6 : vector<296x8xi1>, vector<296x8xbf16>
    %22 = vector.extract_strided_slice %15 {offsets = [0, 0], sizes = [256, 8], strides = [1, 1]} : vector<296x8xbf16> to vector<256x8xbf16>
    %23 = vector.extract_strided_slice %6 {offsets = [1, 0], sizes = [256, 8], strides = [1, 1]} : vector<296x8xbf16> to vector<256x8xbf16>
    %24 = vector.extract_strided_slice %21 {offsets = [2, 0], sizes = [256, 8], strides = [1, 1]} : vector<296x8xbf16> to vector<256x8xbf16>
    %25 = vector.extract_strided_slice %15 {offsets = [16, 0], sizes = [256, 8], strides = [1, 1]} : vector<296x8xbf16> to vector<256x8xbf16>
    %26 = vector.extract_strided_slice %6 {offsets = [17, 0], sizes = [256, 8], strides = [1, 1]} : vector<296x8xbf16> to vector<256x8xbf16>
    %27 = vector.extract_strided_slice %21 {offsets = [18, 0], sizes = [256, 8], strides = [1, 1]} : vector<296x8xbf16> to vector<256x8xbf16>
    %28 = vector.extract_strided_slice %15 {offsets = [32, 0], sizes = [256, 8], strides = [1, 1]} : vector<296x8xbf16> to vector<256x8xbf16>
    %29 = vector.extract_strided_slice %6 {offsets = [33, 0], sizes = [256, 8], strides = [1, 1]} : vector<296x8xbf16> to vector<256x8xbf16>
    %30 = vector.extract_strided_slice %21 {offsets = [34, 0], sizes = [256, 8], strides = [1, 1]} : vector<296x8xbf16> to vector<256x8xbf16>
    %31 = tpu.concatenate %22, %23, %24, %25, %26, %27, %28, %29, %30 in 1 : vector<256x8xbf16>, vector<256x8xbf16>, vector<256x8xbf16>, vector<256x8xbf16>, vector<256x8xbf16>, vector<256x8xbf16>, vector<256x8xbf16>, vector<256x8xbf16>, vector<256x8xbf16> -> vector<256x72xbf16>
    %c0_3 = arith.constant 0 : index
    %c0_4 = arith.constant 0 : index
    %32 = vector.load %arg3[%c0_3, %c0_4] : memref<72x4xbf16, #tpu.memory_space<vmem>>, vector<72x4xbf16>
    %cst_5 = arith.constant dense<0.000000e+00> : vector<256x4xf32>
    %33 = tpu.matmul %31, %32, %cst_5 {dimension_numbers = #tpu.dot_dimension_numbers<[1], [0], [0], [1], [0, 0, 1, 1], [], []>} : vector<256x72xbf16>, vector<72x4xbf16>, vector<256x4xf32> -> vector<256x4xf32>
    %c0_6 = arith.constant 0 : index
    %c0_7 = arith.constant 0 : index
    %34 = vector.load %arg4[%c0_6, %c0_7] : memref<1x4xf32, #tpu.memory_space<vmem>>, vector<1x4xf32>
    %35 = vector.broadcast %34 : vector<1x4xf32> to vector<256x4xf32>
    %36 = arith.addf %33, %35 : vector<256x4xf32>
    %37 = arith.truncf %36 : vector<256x4xf32> to vector<256x4xbf16>
    %c0_8 = arith.constant 0 : index
    %c0_9 = arith.constant 0 : index
    %c0_10 = arith.constant 0 : index
    %38 = vector.load %arg5[%c0_8, %c0_9, %c0_10] : memref<1x256x4xbf16, #tpu.memory_space<vmem>>, vector<1x256x4xbf16>
    %39 = vector.shape_cast %38 : vector<1x256x4xbf16> to vector<256x4xbf16>
    %40 = vector.shape_cast %37 : vector<256x4xbf16> to vector<1x256x4xbf16>
    tpu.vector_store %arg5[%c0_8, %c0_9, %c0_10], %40 {strides = array<i32>} : memref<1x256x4xbf16, #tpu.memory_space<vmem>>, vector<1x256x4xbf16>,
    return
  }
  func.func @transform_0(%arg0: i32, %arg1: i32) -> (i32, i32, i32) {
    %c0_i32 = arith.constant 0 : i32
    %c0_i32_0 = arith.constant 0 : i32
    %c0_i32_1 = arith.constant 0 : i32
    return %arg0, %c0_i32, %c0_i32_0 : i32, i32, i32
  }
  func.func @transform_1(%arg0: i32, %arg1: i32) -> (i32, i32) {
    %c0_i32 = arith.constant 0 : i32
    %c0_i32_0 = arith.constant 0 : i32
    %c0_i32_1 = arith.constant 0 : i32
    return %c0_i32, %c0_i32_0 : i32, i32
  }
  func.func @transform_2(%arg0: i32, %arg1: i32) -> (i32, i32) {
    %c0_i32 = arith.constant 0 : i32
    %c0_i32_0 = arith.constant 0 : i32
    %c0_i32_1 = arith.constant 0 : i32
    return %c0_i32, %c0_i32_0 : i32, i32
  }
  func.func @transform_3(%arg0: i32, %arg1: i32) -> (i32, i32, i32) {
    %c0_i32 = arith.constant 0 : i32
    %c0_i32_0 = arith.constant 0 : i32
    return %arg0, %arg1, %c0_i32 : i32, i32, i32
  }
}

</mosaic_0001>

<llo_original>
// kernel: tpu_custom_call.1
$region0: #{tpu_custom_call.1}
  #allocation0 [shape = 'u32[]', space=smem, size = 0x4, offset = 0x4, fixed_abs, tag = 'smem constant byte address 0x4 - core index']
  #allocation1 [shape = 'u32[72,128]{1,0:T(1,128)}', space=vmem, size = 0x9000, scoped, tag = 'internal scratch']
  %s0 = inlined_call_operand.vmem [shape: bf16[2,298,8], index: 0, kind: input, shape index: {}]
  %s1 = inlined_call_operand.vmem [shape: bf16[72,4], index: 1, kind: input, shape index: {}]
  %s2 = inlined_call_operand.vmem [shape: f32[1,4], index: 2, kind: input, shape index: {}]
  %s3 = inlined_call_operand.vmem [shape: bf16[2,256,4], index: 3, kind: output, shape index: {}]
  %s4 = sld [smem:[#allocation0]]
  $region45: #{tpu_custom_call.1} parent=0
    _
  %s6 = ssub.s32 1, %s4
  %s7 = scalar_select 0, %s6, %s4
  loop: start=0, step=1, limit=4
  $region2: #{tpu_custom_call.1} parent=0 // loop_pre_header
    _
  $region3: #{tpu_custom_call.1} parent=0 // loop_header
    %s9 = sphi 0, %s13
    %p10 = scmp.ge.s32.totalorder %s9, 4
    %s16 = sphi 0, %s28
    %s17 = sphi 0, %s24
    %s18 = sphi 0, %s16
    %s19 = sphi 0, %s17
    %s20 = sphi 0, %s18
    %s21 = sphi 0, %s19
    %s31 = sphi 0, %s33
    %s34 = sphi 0, %s31
    %s35 = sphi 0, %s34
    %s51 = sphi 0, %s35
    %s55 = sphi 0, %s55
    %s57 = sphi 0, %s55
    %s58 = sphi 0, %s57
    %s72 = sphi 0, %s58
    %s76 = sphi 0, %s76
    %s78 = sphi 0, %s76
    %s79 = sphi 0, %s78
    %s93 = sphi 0, %s79
    %s101 = sphi 0, %s103
    %s104 = sphi 0, %s101
    %s105 = sphi 0, %s104
    %s121 = sphi 0, %s105
  $region4: #{tpu_custom_call.1} parent=0 // loop_header_branch
    %12 = sbr.rel (%p10) target = $region8
  $region5: #{tpu_custom_call.1} parent=0 // loop_body
    %s14 = ssub.s32 %s9, 1
    %s15 = ssub.s32 %s9, 2
    %s22 = sadd.s32 1, %s17
    %p23 = scmp.ge.s32.totalorder %s22, 1
    %s24 = scalar_select %p23, 0, %s22
    %s25 = sadd.s32 1, %s16
    %s26 = scalar_select %p23, %s25, %s16
    %p27 = scmp.ge.s32.totalorder %s26, 2
    %s28 = scalar_select %p27, 0, %s26
    %s29 = ssub.s32 %s16, %s28
    %p30 = scmp.eq.s32.totalorder %s29, 0
    %s32 = sadd.s32 %s31, 1
    %s33 = scalar_select %p30, %s31, %s32
    %p36 = pneg %p30
    %p37 = scmp.eq.s32.totalorder %s9, 1
    %p38 = por %p36, %p37
    %p39 = scmp.ne.s32.totalorder %s31, %s34
    %p40 = scmp.eq.s32.totalorder %s9, 0
    %p41 = por %p39, %p40
    %p42 = scmp.ne.s32.totalorder %s31, %s34
    %p43 = scmp.eq.s32.totalorder %s14, 1
    %p44 = por %p42, %p43
    %p45 = scmp.ne.s32.totalorder %s34, %s35
    %p46 = scmp.eq.s32.totalorder %s14, 0
    %p47 = por %p45, %p46
    %p48 = scmp.ne.s32.totalorder %s34, %s35
    %p49 = scmp.eq.s32.totalorder %s15, 1
    %p50 = por %p48, %p49
    %p52 = scmp.ne.s32.totalorder %s35, %s51
    %p53 = scmp.eq.s32.totalorder %s15, 0
    %p54 = por %p52, %p53
    %s56 = sadd.s32 %s55, 1
    %p59 = scmp.eq.s32.totalorder %s9, 1
    %p60 = scmp.ne.s32.totalorder %s55, %s57
    %p61 = scmp.eq.s32.totalorder %s9, 0
    %p62 = por %p60, %p61
    %p63 = scmp.ne.s32.totalorder %s55, %s57
    %p64 = scmp.eq.s32.totalorder %s14, 1
    %p65 = por %p63, %p64
    %p66 = scmp.ne.s32.totalorder %s57, %s58
    %p67 = scmp.eq.s32.totalorder %s14, 0
    %p68 = por %p66, %p67
    %p69 = scmp.ne.s32.totalorder %s57, %s58
    %p70 = scmp.eq.s32.totalorder %s15, 1
    %p71 = por %p69, %p70
    %p73 = scmp.ne.s32.totalorder %s58, %s72
    %p74 = scmp.eq.s32.totalorder %s15, 0
    %p75 = por %p73, %p74
    %s77 = sadd.s32 %s76, 1
    %p80 = scmp.eq.s32.totalorder %s9, 1
    %p81 = scmp.ne.s32.totalorder %s76, %s78
    %p82 = scmp.eq.s32.totalorder %s9, 0
    %p83 = por %p81, %p82
    %p84 = scmp.ne.s32.totalorder %s76, %s78
    %p85 = scmp.eq.s32.totalorder %s14, 1
    %p86 = por %p84, %p85
    %p87 = scmp.ne.s32.totalorder %s78, %s79
    %p88 = scmp.eq.s32.totalorder %s14, 0
    %p89 = por %p87, %p88
    %p90 = scmp.ne.s32.totalorder %s78, %s79
    %p91 = scmp.eq.s32.totalorder %s15, 1
    %p92 = por %p90, %p91
    %p94 = scmp.ne.s32.totalorder %s79, %s93
    %p95 = scmp.eq.s32.totalorder %s15, 0
    %p96 = por %p94, %p95
    %s97 = ssub.s32 %s16, %s28
    %s98 = ssub.s32 %s17, %s24
    %s99 = sor.u32 %s97, %s98
    %p100 = scmp.eq.s32.totalorder %s99, 0
    %s102 = sadd.s32 %s101, 1
    %s103 = scalar_select %p100, %s101, %s102
    %p106 = pneg %p100
    %p107 = scmp.eq.s32.totalorder %s9, 1
    %p108 = por %p106, %p107
    %p109 = scmp.ne.s32.totalorder %s101, %s104
    %p110 = scmp.eq.s32.totalorder %s9, 0
    %p111 = por %p109, %p110
    %p112 = scmp.ne.s32.totalorder %s101, %s104
    %p113 = scmp.eq.s32.totalorder %s14, 1
    %p114 = por %p112, %p113
    %p115 = scmp.ne.s32.totalorder %s104, %s105
    %p116 = scmp.eq.s32.totalorder %s14, 0
    %p117 = por %p115, %p116
    %p118 = scmp.ne.s32.totalorder %s104, %s105
    %p119 = scmp.eq.s32.totalorder %s15, 1
    %p120 = por %p118, %p119
    %p122 = scmp.ne.s32.totalorder %s105, %s121
    %p123 = scmp.eq.s32.totalorder %s15, 0
    %p124 = por %p122, %p123
    %p125 = scmp.le.s32.totalorder 1, %s9
    %p126 = scmp.lt.s32.totalorder %s9, 3
    %p127 = pnand %p125, %p126
    %p128 = pneg %p127
    // Predicated region
    $region9: #{tpu_custom_call.1} parent=5 // pred_check
      _
    $region10: #{tpu_custom_call.1} parent=5 // pred_check_branch
      %130 = sbr.rel (%p127) target = $region12
    $region11: #{tpu_custom_call.1} parent=5 // pred_region
      %s131 = ssub.s32 %s9, 1
      // Predicated region
      $region13: #{tpu_custom_call.1} parent=11 // pred_check
        %p132 = pneg %p68
      $region14: #{tpu_custom_call.1} parent=11 // pred_check_branch
        %134 = sbr.rel (%p132) target = $region16
      $region15: #{tpu_custom_call.1} parent=11 // pred_region
        _
      $region16: #{tpu_custom_call.1} parent=11 // pred_fallthru
        _
      // Predicated region
      $region17: #{tpu_custom_call.1} parent=11 // pred_check
        %p135 = pneg %p89
      $region18: #{tpu_custom_call.1} parent=11 // pred_check_branch
        %137 = sbr.rel (%p135) target = $region20
      $region19: #{tpu_custom_call.1} parent=11 // pred_region
        _
      $region20: #{tpu_custom_call.1} parent=11 // pred_fallthru
        _
    $region12: #{tpu_custom_call.1} parent=5 // pred_fallthru
      _
    %p138 = scmp.lt.s32.totalorder %s9, 2
    // Predicated region
    $region21: #{tpu_custom_call.1} parent=5 // pred_check
      %p139 = pneg %p138
    $region22: #{tpu_custom_call.1} parent=5 // pred_check_branch
      %141 = sbr.rel (%p139) target = $region24
    $region23: #{tpu_custom_call.1} parent=5 // pred_region
      // Predicated region
      $region25: #{tpu_custom_call.1} parent=23 // pred_check
        %p142 = pneg %p41
      $region26: #{tpu_custom_call.1} parent=23 // pred_check_branch
        %144 = sbr.rel (%p142) target = $region28
      $region27: #{tpu_custom_call.1} parent=23 // pred_region
        %p145 = scmp.lt.s32.totalorder %s16, 1
        %s146 = scalar_select %p145, %s16, 1
        %s147 = smul.addr %s146, 38
        %s148 = smul.addr %s147, 4
        %s149 = scalar_lea.vmem %s0, %s148
      $region28: #{tpu_custom_call.1} parent=23 // pred_fallthru
        _
    $region24: #{tpu_custom_call.1} parent=5 // pred_fallthru
      _
    %p150 = scmp.le.s32.totalorder 1, %s9
    %p151 = scmp.lt.s32.totalorder %s9, 3
    %p152 = pnand %p150, %p151
    %p153 = pneg %p152
    // Predicated region
    $region29: #{tpu_custom_call.1} parent=5 // pred_check
      _
    $region30: #{tpu_custom_call.1} parent=5 // pred_check_branch
      %155 = sbr.rel (%p152) target = $region32
    $region31: #{tpu_custom_call.1} parent=5 // pred_region
      %s156 = ssub.s32 %s9, 1
      %p157 = scmp.lt.s32.totalorder %s18, 1
      %s158 = scalar_select %p157, %s18, 1
      %s159 = smul.addr %s158, 38
      %s160 = smul.addr %s159, 4
      %s161 = scalar_lea.vmem %s0, %s160
      %p162 = pneg %p47
      %p163 = pneg %p44
      %p164 = pneg %p68
      %p165 = pneg %p65
      %p166 = pneg %p89
      %p167 = pneg %p86
      %p168 = pneg %p117
      %p169 = pneg %p114
      %s170 = smul.u32 32, %s19
      %p171 = scmp.lt.s32.totalorder %s18, 1
      %s172 = scalar_select %p171, %s18, 1
      %p173 = scmp.lt.s32.totalorder %s170, 31
      %s174 = scalar_select %p173, %s170, 31
      %s175 = smul.addr %s172, 32
      %s176 = sadd.s32 %s174, %s175
      %s177 = smul.addr %s176, 4
      %s178 = scalar_lea.vmem %s3, %s177
      %p179 = scmp.lt.s32.totalorder %s18, 1
      %s180 = scalar_select %p179, %s18, 1
      %s181 = smul.addr %s180, 38
      %s182 = smul.addr %s181, 4
      %s183 = scalar_lea.vmem %s0, %s182
      %s184 = smul.u32 32, %s19
      %p185 = scmp.lt.s32.totalorder %s18, 1
      %s186 = scalar_select %p185, %s18, 1
      %p187 = scmp.lt.s32.totalorder %s184, 31
      %s188 = scalar_select %p187, %s184, 31
      %s189 = smul.addr %s186, 32
      %s190 = sadd.s32 %s188, %s189
      %s191 = smul.addr %s190, 4
      %s192 = scalar_lea.vmem %s3, %s191
      %s193 = smul.u32 32, %s19
      %s195 = smul.u32 %s19, 256
      %s196 = sshra.s32 %s195, 3
      %s197 = sand.u32 %s195, 7
      %s198 = smul.addr %s196, 4
      %s199 = scalar_lea.vmem %s183, %s198
      %v200 = vld [vmem:[%s199] sm:$0xf]
      %v201 = vld [vmem:[%s199 + $0x4] sm:$0xf]
      %v202 = vld [vmem:[%s199 + $0x8] sm:$0xf]
      %v203 = vld [vmem:[%s199 + $0xc] sm:$0xf]
      %v204 = vld [vmem:[%s199 + $0x10] sm:$0xf]
      %v205 = vld [vmem:[%s199 + $0x14] sm:$0xf]
      %v206 = vld [vmem:[%s199 + $0x18] sm:$0xf]
      %v207 = vld [vmem:[%s199 + $0x1c] sm:$0xf]
      %v208 = vld [vmem:[%s199 + $0x20] sm:$0xf]
      %v209 = vld [vmem:[%s199 + $0x24] sm:$0xf]
      %v210 = vld [vmem:[%s199 + $0x28] sm:$0xf]
      %v211 = vld [vmem:[%s199 + $0x2c] sm:$0xf]
      %v212 = vld [vmem:[%s199 + $0x30] sm:$0xf]
      %v213 = vld [vmem:[%s199 + $0x34] sm:$0xf]
      %v214 = vld [vmem:[%s199 + $0x38] sm:$0xf]
      %v215 = vld [vmem:[%s199 + $0x3c] sm:$0xf]
      %v216 = vld [vmem:[%s199 + $0x40] sm:$0xf]
      %v217 = vld [vmem:[%s199 + $0x44] sm:$0xf]
      %v218 = vld [vmem:[%s199 + $0x48] sm:$0xf]
      %v219 = vld [vmem:[%s199 + $0x4c] sm:$0xf]
      %v220 = vld [vmem:[%s199 + $0x50] sm:$0xf]
      %v221 = vld [vmem:[%s199 + $0x54] sm:$0xf]
      %v222 = vld [vmem:[%s199 + $0x58] sm:$0xf]
      %v223 = vld [vmem:[%s199 + $0x5c] sm:$0xf]
      %v224 = vld [vmem:[%s199 + $0x60] sm:$0xf]
      %v225 = vld [vmem:[%s199 + $0x64] sm:$0xf]
      %v226 = vld [vmem:[%s199 + $0x68] sm:$0xf]
      %v227 = vld [vmem:[%s199 + $0x6c] sm:$0xf]
      %v228 = vld [vmem:[%s199 + $0x70] sm:$0xf]
      %v229 = vld [vmem:[%s199 + $0x74] sm:$0xf]
      %v230 = vld [vmem:[%s199 + $0x78] sm:$0xf]
      %v231 = vld [vmem:[%s199 + $0x7c] sm:$0xf]
      %v232 = vld [vmem:[%s199 + $0x80] sm:$0xf]
      %v233 = vld [vmem:[%s199 + $0x84] sm:$0xf]
      %v234 = vld [vmem:[%s199 + $0x88] sm:$0xf]
      %v235 = vld [vmem:[%s199 + $0x8c] sm:$0xf]
      %v236 = vld [vmem:[%s199 + $0x90] sm:$0xf]
      %v237 = vunpack.c.l.bf16 %v200
      %v238 = vunpack.c.l.bf16 %v201
      %v239 = vunpack.c.l.bf16 %v202
      %v240 = vunpack.c.l.bf16 %v203
      %v241 = vunpack.c.l.bf16 %v204
      %v242 = vunpack.c.l.bf16 %v205
      %v243 = vunpack.c.l.bf16 %v206
      %v244 = vunpack.c.l.bf16 %v207
      %v245 = vunpack.c.l.bf16 %v208
      %v246 = vunpack.c.l.bf16 %v209
      %v247 = vunpack.c.l.bf16 %v210
      %v248 = vunpack.c.l.bf16 %v211
      %v249 = vunpack.c.l.bf16 %v212
      %v250 = vunpack.c.l.bf16 %v213
      %v251 = vunpack.c.l.bf16 %v214
      %v252 = vunpack.c.l.bf16 %v215
      %v253 = vunpack.c.l.bf16 %v216
      %v254 = vunpack.c.l.bf16 %v217
      %v255 = vunpack.c.l.bf16 %v218
      %v256 = vunpack.c.l.bf16 %v219
      %v257 = vunpack.c.l.bf16 %v220
      %v258 = vunpack.c.l.bf16 %v221
      %v259 = vunpack.c.l.bf16 %v222
      %v260 = vunpack.c.l.bf16 %v223
      %v261 = vunpack.c.l.bf16 %v224
      %v262 = vunpack.c.l.bf16 %v225
      %v263 = vunpack.c.l.bf16 %v226
      %v264 = vunpack.c.l.bf16 %v227
      %v265 = vunpack.c.l.bf16 %v228
      %v266 = vunpack.c.l.bf16 %v229
      %v267 = vunpack.c.l.bf16 %v230
      %v268 = vunpack.c.l.bf16 %v231
      %v269 = vunpack.c.l.bf16 %v232
      %v270 = vunpack.c.l.bf16 %v233
      %v271 = vunpack.c.l.bf16 %v234
      %v272 = vunpack.c.l.bf16 %v235
      %v273 = vunpack.c.l.bf16 %v236
      %v274 = vmax.f32 %v237, 0.0
      %v275 = vmax.f32 %v238, 0.0
      %v276 = vmax.f32 %v239, 0.0
      %v277 = vmax.f32 %v240, 0.0
      %v278 = vmax.f32 %v241, 0.0
      %v279 = vmax.f32 %v242, 0.0
      %v280 = vmax.f32 %v243, 0.0
      %v281 = vmax.f32 %v244, 0.0
      %v282 = vmax.f32 %v245, 0.0
      %v283 = vmax.f32 %v246, 0.0
      %v284 = vmax.f32 %v247, 0.0
      %v285 = vmax.f32 %v248, 0.0
      %v286 = vmax.f32 %v249, 0.0
      %v287 = vmax.f32 %v250, 0.0
      %v288 = vmax.f32 %v251, 0.0
      %v289 = vmax.f32 %v252, 0.0
      %v290 = vmax.f32 %v253, 0.0
      %v291 = vmax.f32 %v254, 0.0
      %v292 = vmax.f32 %v255, 0.0
      %v293 = vmax.f32 %v256, 0.0
      %v294 = vmax.f32 %v257, 0.0
      %v295 = vmax.f32 %v258, 0.0
      %v296 = vmax.f32 %v259, 0.0
      %v297 = vmax.f32 %v260, 0.0
      %v298 = vmax.f32 %v261, 0.0
      %v299 = vmax.f32 %v262, 0.0
      %v300 = vmax.f32 %v263, 0.0
      %v301 = vmax.f32 %v264, 0.0
      %v302 = vmax.f32 %v265, 0.0
      %v303 = vmax.f32 %v266, 0.0
      %v304 = vmax.f32 %v267, 0.0
      %v305 = vmax.f32 %v268, 0.0
      %v306 = vmax.f32 %v269, 0.0
      %v307 = vmax.f32 %v270, 0.0
      %v308 = vmax.f32 %v271, 0.0
      %v309 = vmax.f32 %v272, 0.0
      %v310 = vmax.f32 %v273, 0.0
      %v311 = vpack.c.bf16 %v274, %v274
      %v312 = vpack.c.bf16 %v275, %v275
      %v313 = vpack.c.bf16 %v276, %v276
      %v314 = vpack.c.bf16 %v277, %v277
      %v315 = vpack.c.bf16 %v278, %v278
      %v316 = vpack.c.bf16 %v279, %v279
      %v317 = vpack.c.bf16 %v280, %v280
      %v318 = vpack.c.bf16 %v281, %v281
      %v319 = vpack.c.bf16 %v282, %v282
      %v320 = vpack.c.bf16 %v283, %v283
      %v321 = vpack.c.bf16 %v284, %v284
      %v322 = vpack.c.bf16 %v285, %v285
      %v323 = vpack.c.bf16 %v286, %v286
      %v324 = vpack.c.bf16 %v287, %v287
      %v325 = vpack.c.bf16 %v288, %v288
      %v326 = vpack.c.bf16 %v289, %v289
      %v327 = vpack.c.bf16 %v290, %v290
      %v328 = vpack.c.bf16 %v291, %v291
      %v329 = vpack.c.bf16 %v292, %v292
      %v330 = vpack.c.bf16 %v293, %v293
      %v331 = vpack.c.bf16 %v294, %v294
      %v332 = vpack.c.bf16 %v295, %v295
      %v333 = vpack.c.bf16 %v296, %v296
      %v334 = vpack.c.bf16 %v297, %v297
      %v335 = vpack.c.bf16 %v298, %v298
      %v336 = vpack.c.bf16 %v299, %v299
      %v337 = vpack.c.bf16 %v300, %v300
      %v338 = vpack.c.bf16 %v301, %v301
      %v339 = vpack.c.bf16 %v302, %v302
      %v340 = vpack.c.bf16 %v303, %v303
      %v341 = vpack.c.bf16 %v304, %v304
      %v342 = vpack.c.bf16 %v305, %v305
      %v343 = vpack.c.bf16 %v306, %v306
      %v344 = vpack.c.bf16 %v307, %v307
      %v345 = vpack.c.bf16 %v308, %v308
      %v346 = vpack.c.bf16 %v309, %v309
      %v347 = vpack.c.bf16 %v310, %v310
      %v348 = vlaneseq
      %v349 = vshrl.u32 %v348, 7
      %v350 = vadd.s32 %v349, 8
      %v351 = vadd.s32 %v349, 16
      %v352 = vadd.s32 %v349, 24
      %v353 = vadd.s32 %v349, 32
      %v354 = vadd.s32 %v349, 40
      %v355 = vadd.s32 %v349, 48
      %v356 = vadd.s32 %v349, 56
      %v357 = vadd.s32 %v349, 64
      %v358 = vadd.s32 %v349, 72
      %v359 = vadd.s32 %v349, 80
      %v360 = vadd.s32 %v349, 88
      %v361 = vadd.s32 %v349, 96
      %v362 = vadd.s32 %v349, 104
      %v363 = vadd.s32 %v349, 112
      %v364 = vadd.s32 %v349, 120
      %v365 = vadd.s32 %v349, 128
      %v366 = vadd.s32 %v349, 136
      %v367 = vadd.s32 %v349, 144
      %v368 = vadd.s32 %v349, 152
      %v369 = vadd.s32 %v349, 160
      %v370 = vadd.s32 %v349, 168
      %v371 = vadd.s32 %v349, 176
      %v372 = vadd.s32 %v349, 184
      %v373 = vadd.s32 %v349, 192
      %v374 = vadd.s32 %v349, 200
      %v375 = vadd.s32 %v349, 208
      %v376 = vadd.s32 %v349, 216
      %v377 = vadd.s32 %v349, 224
      %v378 = vadd.s32 %v349, 232
      %v379 = vadd.s32 %v349, 240
      %v380 = vadd.s32 %v349, 248
      %v381 = vadd.s32 %v349, 256
      %v382 = vadd.s32 %v349, 264
      %v383 = vadd.s32 %v349, 272
      %v384 = vadd.s32 %v349, 280
      %v385 = vadd.s32 %v349, 288
      %v386 = vand.u32 %v349, 15
      %v387 = vand.u32 %v350, 15
      %v388 = vand.u32 %v351, 15
      %v389 = vand.u32 %v352, 15
      %v390 = vand.u32 %v353, 15
      %v391 = vand.u32 %v354, 15
      %v392 = vand.u32 %v355, 15
      %v393 = vand.u32 %v356, 15
      %v394 = vand.u32 %v357, 15
      %v395 = vand.u32 %v358, 15
      %v396 = vand.u32 %v359, 15
      %v397 = vand.u32 %v360, 15
      %v398 = vand.u32 %v361, 15
      %v399 = vand.u32 %v362, 15
      %v400 = vand.u32 %v363, 15
      %v401 = vand.u32 %v364, 15
      %v402 = vand.u32 %v365, 15
      %v403 = vand.u32 %v366, 15
      %v404 = vand.u32 %v367, 15
      %v405 = vand.u32 %v368, 15
      %v406 = vand.u32 %v369, 15
      %v407 = vand.u32 %v370, 15
      %v408 = vand.u32 %v371, 15
      %v409 = vand.u32 %v372, 15
      %v410 = vand.u32 %v373, 15
      %v411 = vand.u32 %v374, 15
      %v412 = vand.u32 %v375, 15
      %v413 = vand.u32 %v376, 15
      %v414 = vand.u32 %v377, 15
      %v415 = vand.u32 %v378, 15
      %v416 = vand.u32 %v379, 15
      %v417 = vand.u32 %v380, 15
      %v418 = vand.u32 %v381, 15
      %v419 = vand.u32 %v382, 15
      %v420 = vand.u32 %v383, 15
      %v421 = vand.u32 %v384, 15
      %v422 = vand.u32 %v385, 15
      %vm423 = vcmp.eq.s32.totalorder %v386, 0
      %vm424 = vcmp.eq.s32.totalorder %v387, 0
      %vm425 = vcmp.eq.s32.totalorder %v388, 0
      %vm426 = vcmp.eq.s32.totalorder %v389, 0
      %vm427 = vcmp.eq.s32.totalorder %v390, 0
      %vm428 = vcmp.eq.s32.totalorder %v391, 0
      %vm429 = vcmp.eq.s32.totalorder %v392, 0
      %vm430 = vcmp.eq.s32.totalorder %v393, 0
      %vm431 = vcmp.eq.s32.totalorder %v394, 0
      %vm432 = vcmp.eq.s32.totalorder %v395, 0
      %vm433 = vcmp.eq.s32.totalorder %v396, 0
      %vm434 = vcmp.eq.s32.totalorder %v397, 0
      %vm435 = vcmp.eq.s32.totalorder %v398, 0
      %vm436 = vcmp.eq.s32.totalorder %v399, 0
      %vm437 = vcmp.eq.s32.totalorder %v400, 0
      %vm438 = vcmp.eq.s32.totalorder %v401, 0
      %vm439 = vcmp.eq.s32.totalorder %v402, 0
      %vm440 = vcmp.eq.s32.totalorder %v403, 0
      %vm441 = vcmp.eq.s32.totalorder %v404, 0
      %vm442 = vcmp.eq.s32.totalorder %v405, 0
      %vm443 = vcmp.eq.s32.totalorder %v406, 0
      %vm444 = vcmp.eq.s32.totalorder %v407, 0
      %vm445 = vcmp.eq.s32.totalorder %v408, 0
      %vm446 = vcmp.eq.s32.totalorder %v409, 0
      %vm447 = vcmp.eq.s32.totalorder %v410, 0
      %vm448 = vcmp.eq.s32.totalorder %v411, 0
      %vm449 = vcmp.eq.s32.totalorder %v412, 0
      %vm450 = vcmp.eq.s32.totalorder %v413, 0
      %vm451 = vcmp.eq.s32.totalorder %v414, 0
      %vm452 = vcmp.eq.s32.totalorder %v415, 0
      %vm453 = vcmp.eq.s32.totalorder %v416, 0
      %vm454 = vcmp.eq.s32.totalorder %v417, 0
      %vm455 = vcmp.eq.s32.totalorder %v418, 0
      %vm456 = vcmp.eq.s32.totalorder %v419, 0
      %vm457 = vcmp.eq.s32.totalorder %v420, 0
      %vm458 = vcmp.eq.s32.totalorder %v421, 0
      %v459 = vsel %vm423, 1, 0
      %v460 = vsel %vm424, 1, 0
      %v461 = vsel %vm425, 1, 0
      %v462 = vsel %vm426, 1, 0
      %v463 = vsel %vm427, 1, 0
      %v464 = vsel %vm428, 1, 0
      %v465 = vsel %vm429, 1, 0
      %v466 = vsel %vm430, 1, 0
      %v467 = vsel %vm431, 1, 0
      %v468 = vsel %vm432, 1, 0
      %v469 = vsel %vm433, 1, 0
      %v470 = vsel %vm434, 1, 0
      %v471 = vsel %vm435, 1, 0
      %v472 = vsel %vm436, 1, 0
      %v473 = vsel %vm437, 1, 0
      %v474 = vsel %vm438, 1, 0
      %v475 = vsel %vm439, 1, 0
      %v476 = vsel %vm440, 1, 0
      %v477 = vsel %vm441, 1, 0
      %v478 = vsel %vm442, 1, 0
      %v479 = vsel %vm443, 1, 0
      %v480 = vsel %vm444, 1, 0
      %v481 = vsel %vm445, 1, 0
      %v482 = vsel %vm446, 1, 0
      %v483 = vsel %vm447, 1, 0
      %v484 = vsel %vm448, 1, 0
      %v485 = vsel %vm449, 1, 0
      %v486 = vsel %vm450, 1, 0
      %v487 = vsel %vm451, 1, 0
      %v488 = vsel %vm452, 1, 0
      %v489 = vsel %vm453, 1, 0
      %v490 = vsel %vm454, 1, 0
      %v491 = vsel %vm455, 1, 0
      %v492 = vsel %vm456, 1, 0
      %v493 = vsel %vm457, 1, 0
      %v494 = vsel %vm458, 1, 0
      %vm495 = vcmp.eq.s32.totalorder %v459, 1
      %vm496 = vcmp.eq.s32.totalorder %v460, 1
      %vm497 = vcmp.eq.s32.totalorder %v461, 1
      %vm498 = vcmp.eq.s32.totalorder %v462, 1
      %vm499 = vcmp.eq.s32.totalorder %v463, 1
      %vm500 = vcmp.eq.s32.totalorder %v464, 1
      %vm501 = vcmp.eq.s32.totalorder %v465, 1
      %vm502 = vcmp.eq.s32.totalorder %v466, 1
      %vm503 = vcmp.eq.s32.totalorder %v467, 1
      %vm504 = vcmp.eq.s32.totalorder %v468, 1
      %vm505 = vcmp.eq.s32.totalorder %v469, 1
      %vm506 = vcmp.eq.s32.totalorder %v470, 1
      %vm507 = vcmp.eq.s32.totalorder %v471, 1
      %vm508 = vcmp.eq.s32.totalorder %v472, 1
      %vm509 = vcmp.eq.s32.totalorder %v473, 1
      %vm510 = vcmp.eq.s32.totalorder %v474, 1
      %vm511 = vcmp.eq.s32.totalorder %v475, 1
      %vm512 = vcmp.eq.s32.totalorder %v476, 1
      %vm513 = vcmp.eq.s32.totalorder %v477, 1
      %vm514 = vcmp.eq.s32.totalorder %v478, 1
      %vm515 = vcmp.eq.s32.totalorder %v479, 1
      %vm516 = vcmp.eq.s32.totalorder %v480, 1
      %vm517 = vcmp.eq.s32.totalorder %v481, 1
      %vm518 = vcmp.eq.s32.totalorder %v482, 1
      %vm519 = vcmp.eq.s32.totalorder %v483, 1
      %vm520 = vcmp.eq.s32.totalorder %v484, 1
      %vm521 = vcmp.eq.s32.totalorder %v485, 1
      %vm522 = vcmp.eq.s32.totalorder %v486, 1
      %vm523 = vcmp.eq.s32.totalorder %v487, 1
      %vm524 = vcmp.eq.s32.totalorder %v488, 1
      %vm525 = vcmp.eq.s32.totalorder %v489, 1
      %vm526 = vcmp.eq.s32.totalorder %v490, 1
      %vm527 = vcmp.eq.s32.totalorder %v491, 1
      %vm528 = vcmp.eq.s32.totalorder %v492, 1
      %vm529 = vcmp.eq.s32.totalorder %v493, 1
      %vm530 = vcmp.eq.s32.totalorder %v494, 1
      %vm531 = vmpackc.low %vm495, %vm495
      %vm532 = vmpackc.low %vm496, %vm496
      %vm533 = vmpackc.low %vm497, %vm497
      %vm534 = vmpackc.low %vm498, %vm498
      %vm535 = vmpackc.low %vm499, %vm499
      %vm536 = vmpackc.low %vm500, %vm500
      %vm537 = vmpackc.low %vm501, %vm501
      %vm538 = vmpackc.low %vm502, %vm502
      %vm539 = vmpackc.low %vm503, %vm503
      %vm540 = vmpackc.low %vm504, %vm504
      %vm541 = vmpackc.low %vm505, %vm505
      %vm542 = vmpackc.low %vm506, %vm506
      %vm543 = vmpackc.low %vm507, %vm507
      %vm544 = vmpackc.low %vm508, %vm508
      %vm545 = vmpackc.low %vm509, %vm509
      %vm546 = vmpackc.low %vm510, %vm510
      %vm547 = vmpackc.low %vm511, %vm511
      %vm548 = vmpackc.low %vm512, %vm512
      %vm549 = vmpackc.low %vm513, %vm513
      %vm550 = vmpackc.low %vm514, %vm514
      %vm551 = vmpackc.low %vm515, %vm515
      %vm552 = vmpackc.low %vm516, %vm516
      %vm553 = vmpackc.low %vm517, %vm517
      %vm554 = vmpackc.low %vm518, %vm518
      %vm555 = vmpackc.low %vm519, %vm519
      %vm556 = vmpackc.low %vm520, %vm520
      %vm557 = vmpackc.low %vm521, %vm521
      %vm558 = vmpackc.low %vm522, %vm522
      %vm559 = vmpackc.low %vm523, %vm523
      %vm560 = vmpackc.low %vm524, %vm524
      %vm561 = vmpackc.low %vm525, %vm525
      %vm562 = vmpackc.low %vm526, %vm526
      %vm563 = vmpackc.low %vm527, %vm527
      %vm564 = vmpackc.low %vm528, %vm528
      %vm565 = vmpackc.low %vm529, %vm529
      %vm566 = vmpackc.low %vm530, %vm530
      %v567 = vsel %vm531, 0, %v311
      %v568 = vsel %vm532, 0, %v312
      %v569 = vsel %vm533, 0, %v313
      %v570 = vsel %vm534, 0, %v314
      %v571 = vsel %vm535, 0, %v315
      %v572 = vsel %vm536, 0, %v316
      %v573 = vsel %vm537, 0, %v317
      %v574 = vsel %vm538, 0, %v318
      %v575 = vsel %vm539, 0, %v319
      %v576 = vsel %vm540, 0, %v320
      %v577 = vsel %vm541, 0, %v321
      %v578 = vsel %vm542, 0, %v322
      %v579 = vsel %vm543, 0, %v323
      %v580 = vsel %vm544, 0, %v324
      %v581 = vsel %vm545, 0, %v325
      %v582 = vsel %vm546, 0, %v326
      %v583 = vsel %vm547, 0, %v327
      %v584 = vsel %vm548, 0, %v328
      %v585 = vsel %vm549, 0, %v329
      %v586 = vsel %vm550, 0, %v330
      %v587 = vsel %vm551, 0, %v331
      %v588 = vsel %vm552, 0, %v332
      %v589 = vsel %vm553, 0, %v333
      %v590 = vsel %vm554, 0, %v334
      %v591 = vsel %vm555, 0, %v335
      %v592 = vsel %vm556, 0, %v336
      %v593 = vsel %vm557, 0, %v337
      %v594 = vsel %vm558, 0, %v338
      %v595 = vsel %vm559, 0, %v339
      %v596 = vsel %vm560, 0, %v340
      %v597 = vsel %vm561, 0, %v341
      %v598 = vsel %vm562, 0, %v342
      %v599 = vsel %vm563, 0, %v343
      %v600 = vsel %vm564, 0, %v344
      %v601 = vsel %vm565, 0, %v345
      %v602 = vsel %vm566, 0, %v346
      %vm603 = vcmp.eq.s32.totalorder %v386, 1
      %vm604 = vcmp.eq.s32.totalorder %v387, 1
      %vm605 = vcmp.eq.s32.totalorder %v388, 1
      %vm606 = vcmp.eq.s32.totalorder %v389, 1
      %vm607 = vcmp.eq.s32.totalorder %v390, 1
      %vm608 = vcmp.eq.s32.totalorder %v391, 1
      %vm609 = vcmp.eq.s32.totalorder %v392, 1
      %vm610 = vcmp.eq.s32.totalorder %v393, 1
      %vm611 = vcmp.eq.s32.totalorder %v394, 1
      %vm612 = vcmp.eq.s32.totalorder %v395, 1
      %vm613 = vcmp.eq.s32.totalorder %v396, 1
      %vm614 = vcmp.eq.s32.totalorder %v397, 1
      %vm615 = vcmp.eq.s32.totalorder %v398, 1
      %vm616 = vcmp.eq.s32.totalorder %v399, 1
      %vm617 = vcmp.eq.s32.totalorder %v400, 1
      %vm618 = vcmp.eq.s32.totalorder %v401, 1
      %vm619 = vcmp.eq.s32.totalorder %v402, 1
      %vm620 = vcmp.eq.s32.totalorder %v403, 1
      %vm621 = vcmp.eq.s32.totalorder %v404, 1
      %vm622 = vcmp.eq.s32.totalorder %v405, 1
      %vm623 = vcmp.eq.s32.totalorder %v406, 1
      %vm624 = vcmp.eq.s32.totalorder %v407, 1
      %vm625 = vcmp.eq.s32.totalorder %v408, 1
      %vm626 = vcmp.eq.s32.totalorder %v409, 1
      %vm627 = vcmp.eq.s32.totalorder %v410, 1
      %vm628 = vcmp.eq.s32.totalorder %v411, 1
      %vm629 = vcmp.eq.s32.totalorder %v412, 1
      %vm630 = vcmp.eq.s32.totalorder %v413, 1
      %vm631 = vcmp.eq.s32.totalorder %v414, 1
      %vm632 = vcmp.eq.s32.totalorder %v415, 1
      %vm633 = vcmp.eq.s32.totalorder %v416, 1
      %vm634 = vcmp.eq.s32.totalorder %v417, 1
      %vm635 = vcmp.eq.s32.totalorder %v418, 1
      %vm636 = vcmp.eq.s32.totalorder %v419, 1
      %vm637 = vcmp.eq.s32.totalorder %v420, 1
      %vm638 = vcmp.eq.s32.totalorder %v421, 1
      %vm639 = vcmp.eq.s32.totalorder %v422, 1
      %v640 = vsel %vm603, 1, 0
      %v641 = vsel %vm604, 1, 0
      %v642 = vsel %vm605, 1, 0
      %v643 = vsel %vm606, 1, 0
      %v644 = vsel %vm607, 1, 0
      %v645 = vsel %vm608, 1, 0
      %v646 = vsel %vm609, 1, 0
      %v647 = vsel %vm610, 1, 0
      %v648 = vsel %vm611, 1, 0
      %v649 = vsel %vm612, 1, 0
      %v650 = vsel %vm613, 1, 0
      %v651 = vsel %vm614, 1, 0
      %v652 = vsel %vm615, 1, 0
      %v653 = vsel %vm616, 1, 0
      %v654 = vsel %vm617, 1, 0
      %v655 = vsel %vm618, 1, 0
      %v656 = vsel %vm619, 1, 0
      %v657 = vsel %vm620, 1, 0
      %v658 = vsel %vm621, 1, 0
      %v659 = vsel %vm622, 1, 0
      %v660 = vsel %vm623, 1, 0
      %v661 = vsel %vm624, 1, 0
      %v662 = vsel %vm625, 1, 0
      %v663 = vsel %vm626, 1, 0
      %v664 = vsel %vm627, 1, 0
      %v665 = vsel %vm628, 1, 0
      %v666 = vsel %vm629, 1, 0
      %v667 = vsel %vm630, 1, 0
      %v668 = vsel %vm631, 1, 0
      %v669 = vsel %vm632, 1, 0
      %v670 = vsel %vm633, 1, 0
      %v671 = vsel %vm634, 1, 0
      %v672 = vsel %vm635, 1, 0
      %v673 = vsel %vm636, 1, 0
      %v674 = vsel %vm637, 1, 0
      %v675 = vsel %vm638, 1, 0
      %v676 = vsel %vm639, 1, 0
      %vm677 = vcmp.eq.s32.totalorder %v640, 1
      %vm678 = vcmp.eq.s32.totalorder %v641, 1
      %vm679 = vcmp.eq.s32.totalorder %v642, 1
      %vm680 = vcmp.eq.s32.totalorder %v643, 1
      %vm681 = vcmp.eq.s32.totalorder %v644, 1
      %vm682 = vcmp.eq.s32.totalorder %v645, 1
      %vm683 = vcmp.eq.s32.totalorder %v646, 1
      %vm684 = vcmp.eq.s32.totalorder %v647, 1
      %vm685 = vcmp.eq.s32.totalorder %v648, 1
      %vm686 = vcmp.eq.s32.totalorder %v649, 1
      %vm687 = vcmp.eq.s32.totalorder %v650, 1
      %vm688 = vcmp.eq.s32.totalorder %v651, 1
      %vm689 = vcmp.eq.s32.totalorder %v652, 1
      %vm690 = vcmp.eq.s32.totalorder %v653, 1
      %vm691 = vcmp.eq.s32.totalorder %v654, 1
      %vm692 = vcmp.eq.s32.totalorder %v655, 1
      %vm693 = vcmp.eq.s32.totalorder %v656, 1
      %vm694 = vcmp.eq.s32.totalorder %v657, 1
      %vm695 = vcmp.eq.s32.totalorder %v658, 1
      %vm696 = vcmp.eq.s32.totalorder %v659, 1
      %vm697 = vcmp.eq.s32.totalorder %v660, 1
      %vm698 = vcmp.eq.s32.totalorder %v661, 1
      %vm699 = vcmp.eq.s32.totalorder %v662, 1
      %vm700 = vcmp.eq.s32.totalorder %v663, 1
      %vm701 = vcmp.eq.s32.totalorder %v664, 1
      %vm702 = vcmp.eq.s32.totalorder %v665, 1
      %vm703 = vcmp.eq.s32.totalorder %v666, 1
      %vm704 = vcmp.eq.s32.totalorder %v667, 1
      %vm705 = vcmp.eq.s32.totalorder %v668, 1
      %vm706 = vcmp.eq.s32.totalorder %v669, 1
      %vm707 = vcmp.eq.s32.totalorder %v670, 1
      %vm708 = vcmp.eq.s32.totalorder %v671, 1
      %vm709 = vcmp.eq.s32.totalorder %v672, 1
      %vm710 = vcmp.eq.s32.totalorder %v673, 1
      %vm711 = vcmp.eq.s32.totalorder %v674, 1
      %vm712 = vcmp.eq.s32.totalorder %v675, 1
      %vm713 = vcmp.eq.s32.totalorder %v676, 1
      %vm714 = vmpackc.low %vm677, %vm677
      %vm715 = vmpackc.low %vm678, %vm678
      %vm716 = vmpackc.low %vm679, %vm679
      %vm717 = vmpackc.low %vm680, %vm680
      %vm718 = vmpackc.low %vm681, %vm681
      %vm719 = vmpackc.low %vm682, %vm682
      %vm720 = vmpackc.low %vm683, %vm683
      %vm721 = vmpackc.low %vm684, %vm684
      %vm722 = vmpackc.low %vm685, %vm685
      %vm723 = vmpackc.low %vm686, %vm686
      %vm724 = vmpackc.low %vm687, %vm687
      %vm725 = vmpackc.low %vm688, %vm688
      %vm726 = vmpackc.low %vm689, %vm689
      %vm727 = vmpackc.low %vm690, %vm690
      %vm728 = vmpackc.low %vm691, %vm691
      %vm729 = vmpackc.low %vm692, %vm692
      %vm730 = vmpackc.low %vm693, %vm693
      %vm731 = vmpackc.low %vm694, %vm694
      %vm732 = vmpackc.low %vm695, %vm695
      %vm733 = vmpackc.low %vm696, %vm696
      %vm734 = vmpackc.low %vm697, %vm697
      %vm735 = vmpackc.low %vm698, %vm698
      %vm736 = vmpackc.low %vm699, %vm699
      %vm737 = vmpackc.low %vm700, %vm700
      %vm738 = vmpackc.low %vm701, %vm701
      %vm739 = vmpackc.low %vm702, %vm702
      %vm740 = vmpackc.low %vm703, %vm703
      %vm741 = vmpackc.low %vm704, %vm704
      %vm742 = vmpackc.low %vm705, %vm705
      %vm743 = vmpackc.low %vm706, %vm706
      %vm744 = vmpackc.low %vm707, %vm707
      %vm745 = vmpackc.low %vm708, %vm708
      %vm746 = vmpackc.low %vm709, %vm709
      %vm747 = vmpackc.low %vm710, %vm710
      %vm748 = vmpackc.low %vm711, %vm711
      %vm749 = vmpackc.low %vm712, %vm712
      %vm750 = vmpackc.low %vm713, %vm713
      %v751 = vsel %vm714, 0, %v311
      %v752 = vsel %vm715, 0, %v312
      %v753 = vsel %vm716, 0, %v313
      %v754 = vsel %vm717, 0, %v314
      %v755 = vsel %vm718, 0, %v315
      %v756 = vsel %vm719, 0, %v316
      %v757 = vsel %vm720, 0, %v317
      %v758 = vsel %vm721, 0, %v318
      %v759 = vsel %vm722, 0, %v319
      %v760 = vsel %vm723, 0, %v320
      %v761 = vsel %vm724, 0, %v321
      %v762 = vsel %vm725, 0, %v322
      %v763 = vsel %vm726, 0, %v323
      %v764 = vsel %vm727, 0, %v324
      %v765 = vsel %vm728, 0, %v325
      %v766 = vsel %vm729, 0, %v326
      %v767 = vsel %vm730, 0, %v327
      %v768 = vsel %vm731, 0, %v328
      %v769 = vsel %vm732, 0, %v329
      %v770 = vsel %vm733, 0, %v330
      %v771 = vsel %vm734, 0, %v331
      %v772 = vsel %vm735, 0, %v332
      %v773 = vsel %vm736, 0, %v333
      %v774 = vsel %vm737, 0, %v334
      %v775 = vsel %vm738, 0, %v335
      %v776 = vsel %vm739, 0, %v336
      %v777 = vsel %vm740, 0, %v337
      %v778 = vsel %vm741, 0, %v338
      %v779 = vsel %vm742, 0, %v339
      %v780 = vsel %vm743, 0, %v340
      %v781 = vsel %vm744, 0, %v341
      %v782 = vsel %vm745, 0, %v342
      %v783 = vsel %vm746, 0, %v343
      %v784 = vsel %vm747, 0, %v344
      %v785 = vsel %vm748, 0, %v345
      %v786 = vsel %vm749, 0, %v346
      %v787 = vsel %vm750, 0, %v347
      %v820 = vunpack.c.l.b16 %v567
      %v821 = vunpack.c.l.b16 %v568
      %v822 = vunpack.c.l.b16 %v569
      %v823 = vunpack.c.l.b16 %v570
      %v824 = vunpack.c.l.b16 %v571
      %v825 = vunpack.c.l.b16 %v572
      %v826 = vunpack.c.l.b16 %v573
      %v827 = vunpack.c.l.b16 %v574
      %v828 = vunpack.c.l.b16 %v575
      %v829 = vunpack.c.l.b16 %v576
      %v830 = vunpack.c.l.b16 %v577
      %v831 = vunpack.c.l.b16 %v578
      %v832 = vunpack.c.l.b16 %v579
      %v833 = vunpack.c.l.b16 %v580
      %v834 = vunpack.c.l.b16 %v581
      %v835 = vunpack.c.l.b16 %v582
      %v836 = vunpack.c.l.b16 %v583
      %v837 = vunpack.c.l.b16 %v584
      %v838 = vunpack.c.l.b16 %v585
      %v839 = vunpack.c.l.b16 %v586
      %v840 = vunpack.c.l.b16 %v587
      %v841 = vunpack.c.l.b16 %v588
      %v842 = vunpack.c.l.b16 %v589
      %v843 = vunpack.c.l.b16 %v590
      %v844 = vunpack.c.l.b16 %v591
      %v845 = vunpack.c.l.b16 %v592
      %v846 = vunpack.c.l.b16 %v593
      %v847 = vunpack.c.l.b16 %v594
      %v848 = vunpack.c.l.b16 %v595
      %v849 = vunpack.c.l.b16 %v596
      %v850 = vunpack.c.l.b16 %v597
      %v851 = vunpack.c.l.b16 %v598
      %v852 = vpack.c.b16 %v821, %v820
      %v853 = vpack.c.b16 %v823, %v822
      %v854 = vpack.c.b16 %v825, %v824
      %v855 = vpack.c.b16 %v827, %v826
      %v856 = vpack.c.b16 %v829, %v828
      %v857 = vpack.c.b16 %v831, %v830
      %v858 = vpack.c.b16 %v833, %v832
      %v859 = vpack.c.b16 %v835, %v834
      %v860 = vpack.c.b16 %v837, %v836
      %v861 = vpack.c.b16 %v839, %v838
      %v862 = vpack.c.b16 %v841, %v840
      %v863 = vpack.c.b16 %v843, %v842
      %v864 = vpack.c.b16 %v845, %v844
      %v865 = vpack.c.b16 %v847, %v846
      %v866 = vpack.c.b16 %v849, %v848
      %v867 = vpack.c.b16 %v851, %v850
      %v901 = vunpack.c.l.b16 %v311
      %v902 = vunpack.c.l.b16 %v312
      %v903 = vunpack.c.l.b16 %v313
      %v904 = vunpack.c.l.b16 %v314
      %v905 = vunpack.c.l.b16 %v315
      %v906 = vunpack.c.l.b16 %v316
      %v907 = vunpack.c.l.b16 %v317
      %v908 = vunpack.c.l.b16 %v318
      %v909 = vunpack.c.l.b16 %v319
      %v910 = vunpack.c.l.b16 %v320
      %v911 = vunpack.c.l.b16 %v321
      %v912 = vunpack.c.l.b16 %v322
      %v913 = vunpack.c.l.b16 %v323
      %v914 = vunpack.c.l.b16 %v324
      %v915 = vunpack.c.l.b16 %v325
      %v916 = vunpack.c.l.b16 %v326
      %v917 = vunpack.c.l.b16 %v327
      %v918 = vunpack.c.l.b16 %v328
      %v919 = vunpack.c.l.b16 %v329
      %v920 = vunpack.c.l.b16 %v330
      %v921 = vunpack.c.l.b16 %v331
      %v922 = vunpack.c.l.b16 %v332
      %v923 = vunpack.c.l.b16 %v333
      %v924 = vunpack.c.l.b16 %v334
      %v925 = vunpack.c.l.b16 %v335
      %v926 = vunpack.c.l.b16 %v336
      %v927 = vunpack.c.l.b16 %v337
      %v928 = vunpack.c.l.b16 %v338
      %v929 = vunpack.c.l.b16 %v339
      %v930 = vunpack.c.l.b16 %v340
      %v931 = vunpack.c.l.b16 %v341
      %v932 = vunpack.c.l.b16 %v342
      %v933 = vunpack.c.l.b16 %v343
      %v934 = vpack.c.b16 %v902, %v901
      %v935 = vpack.c.b16 %v904, %v903
      %v936 = vpack.c.b16 %v906, %v905
      %v937 = vpack.c.b16 %v908, %v907
      %v938 = vpack.c.b16 %v910, %v909
      %v939 = vpack.c.b16 %v912, %v911
      %v940 = vpack.c.b16 %v914, %v913
      %v941 = vpack.c.b16 %v916, %v915
      %v942 = vpack.c.b16 %v918, %v917
      %v943 = vpack.c.b16 %v920, %v919
      %v944 = vpack.c.b16 %v922, %v921
      %v945 = vpack.c.b16 %v924, %v923
      %v946 = vpack.c.b16 %v926, %v925
      %v947 = vpack.c.b16 %v928, %v927
      %v948 = vpack.c.b16 %v930, %v929
      %v949 = vpack.c.b16 %v932, %v931
      %v950 = vpack.c.b16 %v933, %v933
      %vm951 = vsmask.f32 7424
      %v953 = vshrl.u32 %v934, 16
      %v955 = vshll.u32 %v934, 16
      %v957 = vrot.slane %v955, 1
      %v958 = vor.u32 %v953, %v957
      %v960 = vshll.u32 %v935, 16
      %v962 = vrot.slane %v960, 1
      %v963 = vsel %vm951, %v958, %v962
      %v964 = vshrl.u32 %v935, 16
      %v966 = vor.u32 %v964, %v962
      %v968 = vshll.u32 %v936, 16
      %v970 = vrot.slane %v968, 1
      %v971 = vsel %vm951, %v966, %v970
      %v972 = vshrl.u32 %v936, 16
      %v974 = vor.u32 %v972, %v970
      %v976 = vshll.u32 %v937, 16
      %v978 = vrot.slane %v976, 1
      %v979 = vsel %vm951, %v974, %v978
      %v980 = vshrl.u32 %v937, 16
      %v982 = vor.u32 %v980, %v978
      %v984 = vshll.u32 %v938, 16
      %v986 = vrot.slane %v984, 1
      %v987 = vsel %vm951, %v982, %v986
      %v988 = vshrl.u32 %v938, 16
      %v990 = vor.u32 %v988, %v986
      %v992 = vshll.u32 %v939, 16
      %v994 = vrot.slane %v992, 1
      %v995 = vsel %vm951, %v990, %v994
      %v996 = vshrl.u32 %v939, 16
      %v998 = vor.u32 %v996, %v994
      %v1000 = vshll.u32 %v940, 16
      %v1002 = vrot.slane %v1000, 1
      %v1003 = vsel %vm951, %v998, %v1002
      %v1004 = vshrl.u32 %v940, 16
      %v1006 = vor.u32 %v1004, %v1002
      %v1008 = vshll.u32 %v941, 16
      %v1010 = vrot.slane %v1008, 1
      %v1011 = vsel %vm951, %v1006, %v1010
      %v1012 = vshrl.u32 %v941, 16
      %v1014 = vor.u32 %v1012, %v1010
      %v1016 = vshll.u32 %v942, 16
      %v1018 = vrot.slane %v1016, 1
      %v1019 = vsel %vm951, %v1014, %v1018
      %v1020 = vshrl.u32 %v942, 16
      %v1022 = vor.u32 %v1020, %v1018
      %v1024 = vshll.u32 %v943, 16
      %v1026 = vrot.slane %v1024, 1
      %v1027 = vsel %vm951, %v1022, %v1026
      %v1028 = vshrl.u32 %v943, 16
      %v1030 = vor.u32 %v1028, %v1026
      %v1032 = vshll.u32 %v944, 16
      %v1034 = vrot.slane %v1032, 1
      %v1035 = vsel %vm951, %v1030, %v1034
      %v1036 = vshrl.u32 %v944, 16
      %v1038 = vor.u32 %v1036, %v1034
      %v1040 = vshll.u32 %v945, 16
      %v1042 = vrot.slane %v1040, 1
      %v1043 = vsel %vm951, %v1038, %v1042
      %v1044 = vshrl.u32 %v945, 16
      %v1046 = vor.u32 %v1044, %v1042
      %v1048 = vshll.u32 %v946, 16
      %v1050 = vrot.slane %v1048, 1
      %v1051 = vsel %vm951, %v1046, %v1050
      %v1052 = vshrl.u32 %v946, 16
      %v1054 = vor.u32 %v1052, %v1050
      %v1056 = vshll.u32 %v947, 16
      %v1058 = vrot.slane %v1056, 1
      %v1059 = vsel %vm951, %v1054, %v1058
      %v1060 = vshrl.u32 %v947, 16
      %v1062 = vor.u32 %v1060, %v1058
      %v1064 = vshll.u32 %v948, 16
      %v1066 = vrot.slane %v1064, 1
      %v1067 = vsel %vm951, %v1062, %v1066
      %v1068 = vshrl.u32 %v948, 16
      %v1070 = vor.u32 %v1068, %v1066
      %v1072 = vshll.u32 %v949, 16
      %v1074 = vrot.slane %v1072, 1
      %v1075 = vsel %vm951, %v1070, %v1074
      %v1076 = vshrl.u32 %v949, 16
      %v1078 = vor.u32 %v1076, %v1074
      %v1080 = vshll.u32 %v950, 16
      %v1082 = vrot.slane %v1080, 1
      %v1083 = vsel %vm951, %v1078, %v1082
      %1084 = vrot.lane.b32.xlu0 %v963, 8
      %v1085 = vpop.permute.xlu0 %1084
      %1086 = vrot.lane.b32.xlu0 %v971, 8
      %v1087 = vpop.permute.xlu0 %1086
      %1088 = vrot.lane.b32.xlu0 %v979, 8
      %v1089 = vpop.permute.xlu0 %1088
      %1090 = vrot.lane.b32.xlu0 %v987, 8
      %v1091 = vpop.permute.xlu0 %1090
      %1092 = vrot.lane.b32.xlu0 %v995, 8
      %v1093 = vpop.permute.xlu0 %1092
      %1094 = vrot.lane.b32.xlu0 %v1003, 8
      %v1095 = vpop.permute.xlu0 %1094
      %1096 = vrot.lane.b32.xlu0 %v1011, 8
      %v1097 = vpop.permute.xlu0 %1096
      %1098 = vrot.lane.b32.xlu0 %v1019, 8
      %v1099 = vpop.permute.xlu0 %1098
      %1100 = vrot.lane.b32.xlu0 %v1027, 8
      %v1101 = vpop.permute.xlu0 %1100
      %1102 = vrot.lane.b32.xlu0 %v1035, 8
      %v1103 = vpop.permute.xlu0 %1102
      %1104 = vrot.lane.b32.xlu0 %v1043, 8
      %v1105 = vpop.permute.xlu0 %1104
      %1106 = vrot.lane.b32.xlu0 %v1051, 8
      %v1107 = vpop.permute.xlu0 %1106
      %1108 = vrot.lane.b32.xlu0 %v1059, 8
      %v1109 = vpop.permute.xlu0 %1108
      %1110 = vrot.lane.b32.xlu0 %v1067, 8
      %v1111 = vpop.permute.xlu0 %1110
      %1112 = vrot.lane.b32.xlu0 %v1075, 8
      %v1113 = vpop.permute.xlu0 %1112
      %1114 = vrot.lane.b32.xlu0 %v1083, 8
      %v1115 = vpop.permute.xlu0 %1114
      %v1149 = vunpack.c.l.b16 %v751
      %v1150 = vunpack.c.l.b16 %v752
      %v1151 = vunpack.c.l.b16 %v753
      %v1152 = vunpack.c.l.b16 %v754
      %v1153 = vunpack.c.l.b16 %v755
      %v1154 = vunpack.c.l.b16 %v756
      %v1155 = vunpack.c.l.b16 %v757
      %v1156 = vunpack.c.l.b16 %v758
      %v1157 = vunpack.c.l.b16 %v759
      %v1158 = vunpack.c.l.b16 %v760
      %v1159 = vunpack.c.l.b16 %v761
      %v1160 = vunpack.c.l.b16 %v762
      %v1161 = vunpack.c.l.b16 %v763
      %v1162 = vunpack.c.l.b16 %v764
      %v1163 = vunpack.c.l.b16 %v765
      %v1164 = vunpack.c.l.b16 %v766
      %v1165 = vunpack.c.l.b16 %v767
      %v1166 = vunpack.c.l.b16 %v768
      %v1167 = vunpack.c.l.b16 %v769
      %v1168 = vunpack.c.l.b16 %v770
      %v1169 = vunpack.c.l.b16 %v771
      %v1170 = vunpack.c.l.b16 %v772
      %v1171 = vunpack.c.l.b16 %v773
      %v1172 = vunpack.c.l.b16 %v774
      %v1173 = vunpack.c.l.b16 %v775
      %v1174 = vunpack.c.l.b16 %v776
      %v1175 = vunpack.c.l.b16 %v777
      %v1176 = vunpack.c.l.b16 %v778
      %v1177 = vunpack.c.l.b16 %v779
      %v1178 = vunpack.c.l.b16 %v780
      %v1179 = vunpack.c.l.b16 %v781
      %v1180 = vunpack.c.l.b16 %v782
      %v1181 = vunpack.c.l.b16 %v783
      %v1182 = vpack.c.b16 %v1150, %v1149
      %v1183 = vpack.c.b16 %v1152, %v1151
      %v1184 = vpack.c.b16 %v1154, %v1153
      %v1185 = vpack.c.b16 %v1156, %v1155
      %v1186 = vpack.c.b16 %v1158, %v1157
      %v1187 = vpack.c.b16 %v1160, %v1159
      %v1188 = vpack.c.b16 %v1162, %v1161
      %v1189 = vpack.c.b16 %v1164, %v1163
      %v1190 = vpack.c.b16 %v1166, %v1165
      %v1191 = vpack.c.b16 %v1168, %v1167
      %v1192 = vpack.c.b16 %v1170, %v1169
      %v1193 = vpack.c.b16 %v1172, %v1171
      %v1194 = vpack.c.b16 %v1174, %v1173
      %v1195 = vpack.c.b16 %v1176, %v1175
      %v1196 = vpack.c.b16 %v1178, %v1177
      %v1197 = vpack.c.b16 %v1180, %v1179
      %v1198 = vpack.c.b16 %v1181, %v1181
      %vm1199 = vcmask 1046528
      %v1200 = vrot.slane %v1182, 1
      %v1201 = vrot.slane %v1183, 1
      %v1202 = vsel %vm1199, %v1200, %v1201
      %v1203 = vrot.slane %v1184, 1
      %v1204 = vsel %vm1199, %v1201, %v1203
      %v1205 = vrot.slane %v1185, 1
      %v1206 = vsel %vm1199, %v1203, %v1205
      %v1207 = vrot.slane %v1186, 1
      %v1208 = vsel %vm1199, %v1205, %v1207
      %v1209 = vrot.slane %v1187, 1
      %v1210 = vsel %vm1199, %v1207, %v1209
      %v1211 = vrot.slane %v1188, 1
      %v1212 = vsel %vm1199, %v1209, %v1211
      %v1213 = vrot.slane %v1189, 1
      %v1214 = vsel %vm1199, %v1211, %v1213
      %v1215 = vrot.slane %v1190, 1
      %v1216 = vsel %vm1199, %v1213, %v1215
      %v1217 = vrot.slane %v1191, 1
      %v1218 = vsel %vm1199, %v1215, %v1217
      %v1219 = vrot.slane %v1192, 1
      %v1220 = vsel %vm1199, %v1217, %v1219
      %v1221 = vrot.slane %v1193, 1
      %v1222 = vsel %vm1199, %v1219, %v1221
      %v1223 = vrot.slane %v1194, 1
      %v1224 = vsel %vm1199, %v1221, %v1223
      %v1225 = vrot.slane %v1195, 1
      %v1226 = vsel %vm1199, %v1223, %v1225
      %v1227 = vrot.slane %v1196, 1
      %v1228 = vsel %vm1199, %v1225, %v1227
      %v1229 = vrot.slane %v1197, 1
      %v1230 = vsel %vm1199, %v1227, %v1229
      %v1231 = vrot.slane %v1198, 1
      %v1232 = vsel %vm1199, %v1229, %v1231
      %1233 = vrot.lane.b32.xlu0 %v1202, 16
      %v1234 = vpop.permute.xlu0 %1233
      %1235 = vrot.lane.b32.xlu0 %v1204, 16
      %v1236 = vpop.permute.xlu0 %1235
      %1237 = vrot.lane.b32.xlu0 %v1206, 16
      %v1238 = vpop.permute.xlu0 %1237
      %1239 = vrot.lane.b32.xlu0 %v1208, 16
      %v1240 = vpop.permute.xlu0 %1239
      %1241 = vrot.lane.b32.xlu0 %v1210, 16
      %v1242 = vpop.permute.xlu0 %1241
      %1243 = vrot.lane.b32.xlu0 %v1212, 16
      %v1244 = vpop.permute.xlu0 %1243
      %1245 = vrot.lane.b32.xlu0 %v1214, 16
      %v1246 = vpop.permute.xlu0 %1245
      %1247 = vrot.lane.b32.xlu0 %v1216, 16
      %v1248 = vpop.permute.xlu0 %1247
      %1249 = vrot.lane.b32.xlu0 %v1218, 16
      %v1250 = vpop.permute.xlu0 %1249
      %1251 = vrot.lane.b32.xlu0 %v1220, 16
      %v1252 = vpop.permute.xlu0 %1251
      %1253 = vrot.lane.b32.xlu0 %v1222, 16
      %v1254 = vpop.permute.xlu0 %1253
      %1255 = vrot.lane.b32.xlu0 %v1224, 16
      %v1256 = vpop.permute.xlu0 %1255
      %1257 = vrot.lane.b32.xlu0 %v1226, 16
      %v1258 = vpop.permute.xlu0 %1257
      %1259 = vrot.lane.b32.xlu0 %v1228, 16
      %v1260 = vpop.permute.xlu0 %1259
      %1261 = vrot.lane.b32.xlu0 %v1230, 16
      %v1262 = vpop.permute.xlu0 %1261
      %1263 = vrot.lane.b32.xlu0 %v1232, 16
      %v1264 = vpop.permute.xlu0 %1263
      %v1267 = vunpack.c.l.b16 %v599
      %v1268 = vunpack.c.l.b16 %v600
      %v1269 = vpack.c.b16 %v1268, %v1267
      %1270 = vrot.lane.b32.xlu0 %v853, 24
      %v1271 = vpop.permute.xlu0 %1270
      %1272 = vrot.lane.b32.xlu0 %v854, 24
      %v1273 = vpop.permute.xlu0 %1272
      %1274 = vrot.lane.b32.xlu0 %v855, 24
      %v1275 = vpop.permute.xlu0 %1274
      %1276 = vrot.lane.b32.xlu0 %v856, 24
      %v1277 = vpop.permute.xlu0 %1276
      %1278 = vrot.lane.b32.xlu0 %v857, 24
      %v1279 = vpop.permute.xlu0 %1278
      %1280 = vrot.lane.b32.xlu0 %v858, 24
      %v1281 = vpop.permute.xlu0 %1280
      %1282 = vrot.lane.b32.xlu0 %v859, 24
      %v1283 = vpop.permute.xlu0 %1282
      %1284 = vrot.lane.b32.xlu0 %v860, 24
      %v1285 = vpop.permute.xlu0 %1284
      %1286 = vrot.lane.b32.xlu0 %v861, 24
      %v1287 = vpop.permute.xlu0 %1286
      %1288 = vrot.lane.b32.xlu0 %v862, 24
      %v1289 = vpop.permute.xlu0 %1288
      %1290 = vrot.lane.b32.xlu0 %v863, 24
      %v1291 = vpop.permute.xlu0 %1290
      %1292 = vrot.lane.b32.xlu0 %v864, 24
      %v1293 = vpop.permute.xlu0 %1292
      %1294 = vrot.lane.b32.xlu0 %v865, 24
      %v1295 = vpop.permute.xlu0 %1294
      %1296 = vrot.lane.b32.xlu0 %v866, 24
      %v1297 = vpop.permute.xlu0 %1296
      %1298 = vrot.lane.b32.xlu0 %v867, 24
      %v1299 = vpop.permute.xlu0 %1298
      %1300 = vrot.lane.b32.xlu0 %v1269, 24
      %v1301 = vpop.permute.xlu0 %1300
      %v1304 = vunpack.c.l.b16 %v344
      %v1305 = vunpack.c.l.b16 %v345
      %v1306 = vpack.c.b16 %v1304, %v933
      %v1307 = vpack.c.b16 %v1305, %v1305
      %v1309 = vshll.u32 %v1306, 16
      %v1311 = vrot.slane %v1309, 1
      %v1312 = vsel %vm951, %v1078, %v1311
      %v1313 = vshrl.u32 %v1306, 16
      %v1315 = vor.u32 %v1313, %v1311
      %v1317 = vshll.u32 %v1307, 16
      %v1319 = vrot.slane %v1317, 1
      %v1320 = vsel %vm951, %v1315, %v1319
      %1321 = vrot.lane.b32.xlu0 %v971, 32
      %v1322 = vpop.permute.xlu0 %1321
      %1323 = vrot.lane.b32.xlu0 %v979, 32
      %v1324 = vpop.permute.xlu0 %1323
      %1325 = vrot.lane.b32.xlu0 %v987, 32
      %v1326 = vpop.permute.xlu0 %1325
      %1327 = vrot.lane.b32.xlu0 %v995, 32
      %v1328 = vpop.permute.xlu0 %1327
      %1329 = vrot.lane.b32.xlu0 %v1003, 32
      %v1330 = vpop.permute.xlu0 %1329
      %1331 = vrot.lane.b32.xlu0 %v1011, 32
      %v1332 = vpop.permute.xlu0 %1331
      %1333 = vrot.lane.b32.xlu0 %v1019, 32
      %v1334 = vpop.permute.xlu0 %1333
      %1335 = vrot.lane.b32.xlu0 %v1027, 32
      %v1336 = vpop.permute.xlu0 %1335
      %1337 = vrot.lane.b32.xlu0 %v1035, 32
      %v1338 = vpop.permute.xlu0 %1337
      %1339 = vrot.lane.b32.xlu0 %v1043, 32
      %v1340 = vpop.permute.xlu0 %1339
      %1341 = vrot.lane.b32.xlu0 %v1051, 32
      %v1342 = vpop.permute.xlu0 %1341
      %1343 = vrot.lane.b32.xlu0 %v1059, 32
      %v1344 = vpop.permute.xlu0 %1343
      %1345 = vrot.lane.b32.xlu0 %v1067, 32
      %v1346 = vpop.permute.xlu0 %1345
      %1347 = vrot.lane.b32.xlu0 %v1075, 32
      %v1348 = vpop.permute.xlu0 %1347
      %1349 = vrot.lane.b32.xlu0 %v1312, 32
      %v1350 = vpop.permute.xlu0 %1349
      %1351 = vrot.lane.b32.xlu0 %v1320, 32
      %v1352 = vpop.permute.xlu0 %1351
      %v1355 = vunpack.c.l.b16 %v784
      %v1356 = vunpack.c.l.b16 %v785
      %v1357 = vpack.c.b16 %v1355, %v1181
      %v1358 = vpack.c.b16 %v1356, %v1356
      %v1359 = vrot.slane %v1357, 1
      %v1360 = vsel %vm1199, %v1229, %v1359
      %v1361 = vrot.slane %v1358, 1
      %v1362 = vsel %vm1199, %v1359, %v1361
      %1363 = vrot.lane.b32.xlu0 %v1204, 40
      %v1364 = vpop.permute.xlu0 %1363
      %1365 = vrot.lane.b32.xlu0 %v1206, 40
      %v1366 = vpop.permute.xlu0 %1365
      %1367 = vrot.lane.b32.xlu0 %v1208, 40
      %v1368 = vpop.permute.xlu0 %1367
      %1369 = vrot.lane.b32.xlu0 %v1210, 40
      %v1370 = vpop.permute.xlu0 %1369
      %1371 = vrot.lane.b32.xlu0 %v1212, 40
      %v1372 = vpop.permute.xlu0 %1371
      %1373 = vrot.lane.b32.xlu0 %v1214, 40
      %v1374 = vpop.permute.xlu0 %1373
      %1375 = vrot.lane.b32.xlu0 %v1216, 40
      %v1376 = vpop.permute.xlu0 %1375
      %1377 = vrot.lane.b32.xlu0 %v1218, 40
      %v1378 = vpop.permute.xlu0 %1377
      %1379 = vrot.lane.b32.xlu0 %v1220, 40
      %v1380 = vpop.permute.xlu0 %1379
      %1381 = vrot.lane.b32.xlu0 %v1222, 40
      %v1382 = vpop.permute.xlu0 %1381
      %1383 = vrot.lane.b32.xlu0 %v1224, 40
      %v1384 = vpop.permute.xlu0 %1383
      %1385 = vrot.lane.b32.xlu0 %v1226, 40
      %v1386 = vpop.permute.xlu0 %1385
      %1387 = vrot.lane.b32.xlu0 %v1228, 40
      %v1388 = vpop.permute.xlu0 %1387
      %1389 = vrot.lane.b32.xlu0 %v1230, 40
      %v1390 = vpop.permute.xlu0 %1389
      %1391 = vrot.lane.b32.xlu0 %v1360, 40
      %v1392 = vpop.permute.xlu0 %1391
      %1393 = vrot.lane.b32.xlu0 %v1362, 40
      %v1394 = vpop.permute.xlu0 %1393
      %v1397 = vunpack.c.l.b16 %v601
      %v1398 = vunpack.c.l.b16 %v602
      %v1399 = vpack.c.b16 %v1398, %v1397
      %1400 = vrot.lane.b32.xlu0 %v854, 48
      %v1401 = vpop.permute.xlu0 %1400
      %1402 = vrot.lane.b32.xlu0 %v855, 48
      %v1403 = vpop.permute.xlu0 %1402
      %1404 = vrot.lane.b32.xlu0 %v856, 48
      %v1405 = vpop.permute.xlu0 %1404
      %1406 = vrot.lane.b32.xlu0 %v857, 48
      %v1407 = vpop.permute.xlu0 %1406
      %1408 = vrot.lane.b32.xlu0 %v858, 48
      %v1409 = vpop.permute.xlu0 %1408
      %1410 = vrot.lane.b32.xlu0 %v859, 48
      %v1411 = vpop.permute.xlu0 %1410
      %1412 = vrot.lane.b32.xlu0 %v860, 48
      %v1413 = vpop.permute.xlu0 %1412
      %1414 = vrot.lane.b32.xlu0 %v861, 48
      %v1415 = vpop.permute.xlu0 %1414
      %1416 = vrot.lane.b32.xlu0 %v862, 48
      %v1417 = vpop.permute.xlu0 %1416
      %1418 = vrot.lane.b32.xlu0 %v863, 48
      %v1419 = vpop.permute.xlu0 %1418
      %1420 = vrot.lane.b32.xlu0 %v864, 48
      %v1421 = vpop.permute.xlu0 %1420
      %1422 = vrot.lane.b32.xlu0 %v865, 48
      %v1423 = vpop.permute.xlu0 %1422
      %1424 = vrot.lane.b32.xlu0 %v866, 48
      %v1425 = vpop.permute.xlu0 %1424
      %1426 = vrot.lane.b32.xlu0 %v867, 48
      %v1427 = vpop.permute.xlu0 %1426
      %1428 = vrot.lane.b32.xlu0 %v1269, 48
      %v1429 = vpop.permute.xlu0 %1428
      %1430 = vrot.lane.b32.xlu0 %v1399, 48
      %v1431 = vpop.permute.xlu0 %1430
      %v1434 = vunpack.c.l.b16 %v346
      %v1435 = vunpack.c.l.b16 %v347
      %v1436 = vpack.c.b16 %v1434, %v1305
      %v1437 = vpack.c.b16 %v1435, %v1435
      %v1439 = vshll.u32 %v1436, 16
      %v1441 = vrot.slane %v1439, 1
      %v1442 = vsel %vm951, %v1315, %v1441
      %v1443 = vshrl.u32 %v1436, 16
      %v1445 = vor.u32 %v1443, %v1441
      %v1447 = vshll.u32 %v1437, 16
      %v1449 = vrot.slane %v1447, 1
      %v1450 = vsel %vm951, %v1445, %v1449
      %1451 = vrot.lane.b32.xlu0 %v979, 56
      %v1452 = vpop.permute.xlu0 %1451
      %1453 = vrot.lane.b32.xlu0 %v987, 56
      %v1454 = vpop.permute.xlu0 %1453
      %1455 = vrot.lane.b32.xlu0 %v995, 56
      %v1456 = vpop.permute.xlu0 %1455
      %1457 = vrot.lane.b32.xlu0 %v1003, 56
      %v1458 = vpop.permute.xlu0 %1457
      %1459 = vrot.lane.b32.xlu0 %v1011, 56
      %v1460 = vpop.permute.xlu0 %1459
      %1461 = vrot.lane.b32.xlu0 %v1019, 56
      %v1462 = vpop.permute.xlu0 %1461
      %1463 = vrot.lane.b32.xlu0 %v1027, 56
      %v1464 = vpop.permute.xlu0 %1463
      %1465 = vrot.lane.b32.xlu0 %v1035, 56
      %v1466 = vpop.permute.xlu0 %1465
      %1467 = vrot.lane.b32.xlu0 %v1043, 56
      %v1468 = vpop.permute.xlu0 %1467
      %1469 = vrot.lane.b32.xlu0 %v1051, 56
      %v1470 = vpop.permute.xlu0 %1469
      %1471 = vrot.lane.b32.xlu0 %v1059, 56
      %v1472 = vpop.permute.xlu0 %1471
      %1473 = vrot.lane.b32.xlu0 %v1067, 56
      %v1474 = vpop.permute.xlu0 %1473
      %1475 = vrot.lane.b32.xlu0 %v1075, 56
      %v1476 = vpop.permute.xlu0 %1475
      %1477 = vrot.lane.b32.xlu0 %v1312, 56
      %v1478 = vpop.permute.xlu0 %1477
      %1479 = vrot.lane.b32.xlu0 %v1442, 56
      %v1480 = vpop.permute.xlu0 %1479
      %1481 = vrot.lane.b32.xlu0 %v1450, 56
      %v1482 = vpop.permute.xlu0 %1481
      %v1485 = vunpack.c.l.b16 %v786
      %v1486 = vunpack.c.l.b16 %v787
      %v1487 = vpack.c.b16 %v1485, %v1356
      %v1488 = vpack.c.b16 %v1486, %v1486
      %v1489 = vrot.slane %v1487, 1
      %v1490 = vsel %vm1199, %v1359, %v1489
      %v1491 = vrot.slane %v1488, 1
      %v1492 = vsel %vm1199, %v1489, %v1491
      %1493 = vrot.lane.b32.xlu0 %v1206, 64
      %v1494 = vpop.permute.xlu0 %1493
      %1495 = vrot.lane.b32.xlu0 %v1208, 64
      %v1496 = vpop.permute.xlu0 %1495
      %1497 = vrot.lane.b32.xlu0 %v1210, 64
      %v1498 = vpop.permute.xlu0 %1497
      %1499 = vrot.lane.b32.xlu0 %v1212, 64
      %v1500 = vpop.permute.xlu0 %1499
      %1501 = vrot.lane.b32.xlu0 %v1214, 64
      %v1502 = vpop.permute.xlu0 %1501
      %1503 = vrot.lane.b32.xlu0 %v1216, 64
      %v1504 = vpop.permute.xlu0 %1503
      %1505 = vrot.lane.b32.xlu0 %v1218, 64
      %v1506 = vpop.permute.xlu0 %1505
      %1507 = vrot.lane.b32.xlu0 %v1220, 64
      %v1508 = vpop.permute.xlu0 %1507
      %1509 = vrot.lane.b32.xlu0 %v1222, 64
      %v1510 = vpop.permute.xlu0 %1509
      %1511 = vrot.lane.b32.xlu0 %v1224, 64
      %v1512 = vpop.permute.xlu0 %1511
      %1513 = vrot.lane.b32.xlu0 %v1226, 64
      %v1514 = vpop.permute.xlu0 %1513
      %1515 = vrot.lane.b32.xlu0 %v1228, 64
      %v1516 = vpop.permute.xlu0 %1515
      %1517 = vrot.lane.b32.xlu0 %v1230, 64
      %v1518 = vpop.permute.xlu0 %1517
      %1519 = vrot.lane.b32.xlu0 %v1360, 64
      %v1520 = vpop.permute.xlu0 %1519
      %1521 = vrot.lane.b32.xlu0 %v1490, 64
      %v1522 = vpop.permute.xlu0 %1521
      %1523 = vrot.lane.b32.xlu0 %v1492, 64
      %v1524 = vpop.permute.xlu0 %1523
      %vm1525 = vcmask 64512
      %v1528 = vsel %vm1525, %v852, %v1085
      %v1531 = vsel %vm1525, %v853, %v1087
      %v1534 = vsel %vm1525, %v854, %v1089
      %v1537 = vsel %vm1525, %v855, %v1091
      %v1540 = vsel %vm1525, %v856, %v1093
      %v1543 = vsel %vm1525, %v857, %v1095
      %v1546 = vsel %vm1525, %v858, %v1097
      %v1549 = vsel %vm1525, %v859, %v1099
      %v1552 = vsel %vm1525, %v860, %v1101
      %v1555 = vsel %vm1525, %v861, %v1103
      %v1558 = vsel %vm1525, %v862, %v1105
      %v1561 = vsel %vm1525, %v863, %v1107
      %v1564 = vsel %vm1525, %v864, %v1109
      %v1567 = vsel %vm1525, %v865, %v1111
      %v1570 = vsel %vm1525, %v866, %v1113
      %v1573 = vsel %vm1525, %v867, %v1115
      %vm1574 = vcmask 130048
      %v1576 = vsel %vm1574, %v1528, %v1234
      %v1578 = vsel %vm1574, %v1531, %v1236
      %v1580 = vsel %vm1574, %v1534, %v1238
      %v1582 = vsel %vm1574, %v1537, %v1240
      %v1584 = vsel %vm1574, %v1540, %v1242
      %v1586 = vsel %vm1574, %v1543, %v1244
      %v1588 = vsel %vm1574, %v1546, %v1246
      %v1590 = vsel %vm1574, %v1549, %v1248
      %v1592 = vsel %vm1574, %v1552, %v1250
      %v1594 = vsel %vm1574, %v1555, %v1252
      %v1596 = vsel %vm1574, %v1558, %v1254
      %v1598 = vsel %vm1574, %v1561, %v1256
      %v1600 = vsel %vm1574, %v1564, %v1258
      %v1602 = vsel %vm1574, %v1567, %v1260
      %v1604 = vsel %vm1574, %v1570, %v1262
      %v1606 = vsel %vm1574, %v1573, %v1264
      %vm1607 = vcmask 195584
      %v1609 = vsel %vm1607, %v1576, %v1271
      %v1611 = vsel %vm1607, %v1578, %v1273
      %v1613 = vsel %vm1607, %v1580, %v1275
      %v1615 = vsel %vm1607, %v1582, %v1277
      %v1617 = vsel %vm1607, %v1584, %v1279
      %v1619 = vsel %vm1607, %v1586, %v1281
      %v1621 = vsel %vm1607, %v1588, %v1283
      %v1623 = vsel %vm1607, %v1590, %v1285
      %v1625 = vsel %vm1607, %v1592, %v1287
      %v1627 = vsel %vm1607, %v1594, %v1289
      %v1629 = vsel %vm1607, %v1596, %v1291
      %v1631 = vsel %vm1607, %v1598, %v1293
      %v1633 = vsel %vm1607, %v1600, %v1295
      %v1635 = vsel %vm1607, %v1602, %v1297
      %v1637 = vsel %vm1607, %v1604, %v1299
      %v1639 = vsel %vm1607, %v1606, %v1301
      %vm1640 = vcmask 261120
      %v1642 = vsel %vm1640, %v1609, %v1322
      %v1644 = vsel %vm1640, %v1611, %v1324
      %v1646 = vsel %vm1640, %v1613, %v1326
      %v1648 = vsel %vm1640, %v1615, %v1328
      %v1650 = vsel %vm1640, %v1617, %v1330
      %v1652 = vsel %vm1640, %v1619, %v1332
      %v1654 = vsel %vm1640, %v1621, %v1334
      %v1656 = vsel %vm1640, %v1623, %v1336
      %v1658 = vsel %vm1640, %v1625, %v1338
      %v1660 = vsel %vm1640, %v1627, %v1340
      %v1662 = vsel %vm1640, %v1629, %v1342
      %v1664 = vsel %vm1640, %v1631, %v1344
      %v1666 = vsel %vm1640, %v1633, %v1346
      %v1668 = vsel %vm1640, %v1635, %v1348
      %v1670 = vsel %vm1640, %v1637, %v1350
      %v1672 = vsel %vm1640, %v1639, %v1352
      %vm1673 = vcmask 326656
      %v1675 = vsel %vm1673, %v1642, %v1364
      %v1677 = vsel %vm1673, %v1644, %v1366
      %v1679 = vsel %vm1673, %v1646, %v1368
      %v1681 = vsel %vm1673, %v1648, %v1370
      %v1683 = vsel %vm1673, %v1650, %v1372
      %v1685 = vsel %vm1673, %v1652, %v1374
      %v1687 = vsel %vm1673, %v1654, %v1376
      %v1689 = vsel %vm1673, %v1656, %v1378
      %v1691 = vsel %vm1673, %v1658, %v1380
      %v1693 = vsel %vm1673, %v1660, %v1382
      %v1695 = vsel %vm1673, %v1662, %v1384
      %v1697 = vsel %vm1673, %v1664, %v1386
      %v1699 = vsel %vm1673, %v1666, %v1388
      %v1701 = vsel %vm1673, %v1668, %v1390
      %v1703 = vsel %vm1673, %v1670, %v1392
      %v1705 = vsel %vm1673, %v1672, %v1394
      %vm1706 = vcmask 392192
      %v1708 = vsel %vm1706, %v1675, %v1401
      %v1710 = vsel %vm1706, %v1677, %v1403
      %v1712 = vsel %vm1706, %v1679, %v1405
      %v1714 = vsel %vm1706, %v1681, %v1407
      %v1716 = vsel %vm1706, %v1683, %v1409
      %v1718 = vsel %vm1706, %v1685, %v1411
      %v1720 = vsel %vm1706, %v1687, %v1413
      %v1722 = vsel %vm1706, %v1689, %v1415
      %v1724 = vsel %vm1706, %v1691, %v1417
      %v1726 = vsel %vm1706, %v1693, %v1419
      %v1728 = vsel %vm1706, %v1695, %v1421
      %v1730 = vsel %vm1706, %v1697, %v1423
      %v1732 = vsel %vm1706, %v1699, %v1425
      %v1734 = vsel %vm1706, %v1701, %v1427
      %v1736 = vsel %vm1706, %v1703, %v1429
      %v1738 = vsel %vm1706, %v1705, %v1431
      %vm1739 = vcmask 457728
      %v1741 = vsel %vm1739, %v1708, %v1452
      %v1743 = vsel %vm1739, %v1710, %v1454
      %v1745 = vsel %vm1739, %v1712, %v1456
      %v1747 = vsel %vm1739, %v1714, %v1458
      %v1749 = vsel %vm1739, %v1716, %v1460
      %v1751 = vsel %vm1739, %v1718, %v1462
      %v1753 = vsel %vm1739, %v1720, %v1464
      %v1755 = vsel %vm1739, %v1722, %v1466
      %v1757 = vsel %vm1739, %v1724, %v1468
      %v1759 = vsel %vm1739, %v1726, %v1470
      %v1761 = vsel %vm1739, %v1728, %v1472
      %v1763 = vsel %vm1739, %v1730, %v1474
      %v1765 = vsel %vm1739, %v1732, %v1476
      %v1767 = vsel %vm1739, %v1734, %v1478
      %v1769 = vsel %vm1739, %v1736, %v1480
      %v1771 = vsel %vm1739, %v1738, %v1482
      %vm1772 = vcmask 523264
      %v1774 = vsel %vm1772, %v1741, %v1494
      %v1776 = vsel %vm1772, %v1743, %v1496
      %v1778 = vsel %vm1772, %v1745, %v1498
      %v1780 = vsel %vm1772, %v1747, %v1500
      %v1782 = vsel %vm1772, %v1749, %v1502
      %v1784 = vsel %vm1772, %v1751, %v1504
      %v1786 = vsel %vm1772, %v1753, %v1506
      %v1788 = vsel %vm1772, %v1755, %v1508
      %v1790 = vsel %vm1772, %v1757, %v1510
      %v1792 = vsel %vm1772, %v1759, %v1512
      %v1794 = vsel %vm1772, %v1761, %v1514
      %v1796 = vsel %vm1772, %v1763, %v1516
      %v1798 = vsel %vm1772, %v1765, %v1518
      %v1800 = vsel %vm1772, %v1767, %v1520
      %v1802 = vsel %vm1772, %v1769, %v1522
      %v1804 = vsel %vm1772, %v1771, %v1524
      %v1805 = vld [vmem:[%s1] sm:$0xf]
      %v1806 = vld [vmem:[%s1 + $0x4] sm:$0xf]
      %v1807 = vld [vmem:[%s1 + $0x8] sm:$0xf]
      %v1808 = vld [vmem:[%s1 + $0xc] sm:$0xf]
      %v1809 = vld [vmem:[%s1 + $0x10] sm:$0xf]
      %v1810 = vld [vmem:[%s1 + $0x14] sm:$0xf]
      %v1811 = vld [vmem:[%s1 + $0x18] sm:$0xf]
      %v1812 = vld [vmem:[%s1 + $0x1c] sm:$0xf]
      %v1813 = vld [vmem:[%s1 + $0x20] sm:$0xf]
      %v1814 = vld [vmem:[%s2] sm:$0x1]
      %v1816 = vperm.slane %v1814, 0
      %v1827 = vunpack.c.l.b16 %v1805
      %v1828 = vunpack.c.l.b16 %v1806
      %v1829 = vunpack.c.l.b16 %v1807
      %v1830 = vunpack.c.l.b16 %v1808
      %v1831 = vunpack.c.l.b16 %v1809
      %v1832 = vunpack.c.l.b16 %v1810
      %v1833 = vunpack.c.l.b16 %v1811
      %v1834 = vunpack.c.l.b16 %v1812
      %v1835 = vunpack.c.l.b16 %v1813
      %v1836 = vpack.c.b16 %v1828, %v1827
      %v1837 = vpack.c.b16 %v1830, %v1829
      %v1838 = vpack.c.b16 %v1832, %v1831
      %v1839 = vpack.c.b16 %v1834, %v1833
      %v1840 = vpack.c.b16 %v1835, %v1835
      %vm1845 = vcmask 588800
      %v1846 = vsel %vm1845, %v1774, 0
      %v1848 = vsel %vm1845, %v1776, 0
      %v1850 = vsel %vm1845, %v1778, 0
      %v1852 = vsel %vm1845, %v1780, 0
      %v1854 = vsel %vm1845, %v1782, 0
      %v1856 = vsel %vm1845, %v1784, 0
      %v1858 = vsel %vm1845, %v1786, 0
      %v1860 = vsel %vm1845, %v1788, 0
      %v1862 = vsel %vm1845, %v1790, 0
      %v1864 = vsel %vm1845, %v1792, 0
      %v1866 = vsel %vm1845, %v1794, 0
      %v1868 = vsel %vm1845, %v1796, 0
      %v1870 = vsel %vm1845, %v1798, 0
      %v1872 = vsel %vm1845, %v1800, 0
      %v1874 = vsel %vm1845, %v1802, 0
      %v1876 = vsel %vm1845, %v1804, 0
      %vm1878 = vcmask 1043456
      %v1880 = vsel %vm1878, %v1840, 0
      %1882 = vmatpush.bf16.msra.mxu0 0
      %1883 = vmatpush.bf16.msra.mxu0 0
      %1884 = vmatpush.bf16.msra.mxu0 0
      %1885 = vmatpush.bf16.msra.mxu0 %v1880
      %1886 = vmatpush.bf16.msra.mxu0 %v1839
      %1887 = vmatpush.bf16.msra.mxu0 %v1838
      %1888 = vmatpush.bf16.msra.mxu0 %v1837
      %1889 = vmatpush.bf16.msra.mxu0 %v1836
      %1890 = vmatmul.bf16.gmra.mxu0 %v1846
      %v1891 = vpop.f32.mrf.mxu0
      %v1892 = vadd.f32 %v1816, %v1891
      %v1893 = vpop.f32.mrf.mxu0
      %v1894 = vadd.f32 %v1816, %v1893
      %1895 = vmatmul.bf16.gmra.mxu0 %v1848
      %v1896 = vpop.f32.mrf.mxu0
      %v1897 = vadd.f32 %v1816, %v1896
      %v1898 = vpop.f32.mrf.mxu0
      %v1899 = vadd.f32 %v1816, %v1898
      %1900 = vmatmul.bf16.gmra.mxu0 %v1850
      %v1901 = vpop.f32.mrf.mxu0
      %v1902 = vadd.f32 %v1816, %v1901
      %v1903 = vpop.f32.mrf.mxu0
      %v1904 = vadd.f32 %v1816, %v1903
      %1905 = vmatmul.bf16.gmra.mxu0 %v1852
      %v1906 = vpop.f32.mrf.mxu0
      %v1907 = vadd.f32 %v1816, %v1906
      %v1908 = vpop.f32.mrf.mxu0
      %v1909 = vadd.f32 %v1816, %v1908
      %1910 = vmatmul.bf16.gmra.mxu0 %v1854
      %v1911 = vpop.f32.mrf.mxu0
      %v1912 = vadd.f32 %v1816, %v1911
      %v1913 = vpop.f32.mrf.mxu0
      %v1914 = vadd.f32 %v1816, %v1913
      %1915 = vmatmul.bf16.gmra.mxu0 %v1856
      %v1916 = vpop.f32.mrf.mxu0
      %v1917 = vadd.f32 %v1816, %v1916
      %v1918 = vpop.f32.mrf.mxu0
      %v1919 = vadd.f32 %v1816, %v1918
      %1920 = vmatmul.bf16.gmra.mxu0 %v1858
      %v1921 = vpop.f32.mrf.mxu0
      %v1922 = vadd.f32 %v1816, %v1921
      %v1923 = vpop.f32.mrf.mxu0
      %v1924 = vadd.f32 %v1816, %v1923
      %1925 = vmatmul.bf16.gmra.mxu0 %v1860
      %v1926 = vpop.f32.mrf.mxu0
      %v1927 = vadd.f32 %v1816, %v1926
      %v1928 = vpop.f32.mrf.mxu0
      %v1929 = vadd.f32 %v1816, %v1928
      %1930 = vmatmul.bf16.gmra.mxu0 %v1862
      %v1931 = vpop.f32.mrf.mxu0
      %v1932 = vadd.f32 %v1816, %v1931
      %v1933 = vpop.f32.mrf.mxu0
      %v1934 = vadd.f32 %v1816, %v1933
      %1935 = vmatmul.bf16.gmra.mxu0 %v1864
      %v1936 = vpop.f32.mrf.mxu0
      %v1937 = vadd.f32 %v1816, %v1936
      %v1938 = vpop.f32.mrf.mxu0
      %v1939 = vadd.f32 %v1816, %v1938
      %1940 = vmatmul.bf16.gmra.mxu0 %v1866
      %v1941 = vpop.f32.mrf.mxu0
      %v1942 = vadd.f32 %v1816, %v1941
      %v1943 = vpop.f32.mrf.mxu0
      %v1944 = vadd.f32 %v1816, %v1943
      %1945 = vmatmul.bf16.gmra.mxu0 %v1868
      %v1946 = vpop.f32.mrf.mxu0
      %v1947 = vadd.f32 %v1816, %v1946
      %v1948 = vpop.f32.mrf.mxu0
      %v1949 = vadd.f32 %v1816, %v1948
      %1950 = vmatmul.bf16.gmra.mxu0 %v1870
      %v1951 = vpop.f32.mrf.mxu0
      %v1952 = vadd.f32 %v1816, %v1951
      %v1953 = vpop.f32.mrf.mxu0
      %v1954 = vadd.f32 %v1816, %v1953
      %1955 = vmatmul.bf16.gmra.mxu0 %v1872
      %v1956 = vpop.f32.mrf.mxu0
      %v1957 = vadd.f32 %v1816, %v1956
      %v1958 = vpop.f32.mrf.mxu0
      %v1959 = vadd.f32 %v1816, %v1958
      %1960 = vmatmul.bf16.gmra.mxu0 %v1874
      %v1961 = vpop.f32.mrf.mxu0
      %v1962 = vadd.f32 %v1816, %v1961
      %v1963 = vpop.f32.mrf.mxu0
      %v1964 = vadd.f32 %v1816, %v1963
      %1965 = vmatmul.bf16.gmra.mxu0 %v1876
      %v1966 = vpop.f32.mrf.mxu0
      %v1967 = vadd.f32 %v1816, %v1966
      %v1968 = vpop.f32.mrf.mxu0
      %v1969 = vadd.f32 %v1816, %v1968
      %1970 = vdwg.mxu0
      %v1971 = vpack.c.bf16 %v1892, %v1892
      %v1972 = vpack.c.bf16 %v1894, %v1894
      %v1973 = vpack.c.bf16 %v1897, %v1897
      %v1974 = vpack.c.bf16 %v1899, %v1899
      %v1975 = vpack.c.bf16 %v1902, %v1902
      %v1976 = vpack.c.bf16 %v1904, %v1904
      %v1977 = vpack.c.bf16 %v1907, %v1907
      %v1978 = vpack.c.bf16 %v1909, %v1909
      %v1979 = vpack.c.bf16 %v1912, %v1912
      %v1980 = vpack.c.bf16 %v1914, %v1914
      %v1981 = vpack.c.bf16 %v1917, %v1917
      %v1982 = vpack.c.bf16 %v1919, %v1919
      %v1983 = vpack.c.bf16 %v1922, %v1922
      %v1984 = vpack.c.bf16 %v1924, %v1924
      %v1985 = vpack.c.bf16 %v1927, %v1927
      %v1986 = vpack.c.bf16 %v1929, %v1929
      %v1987 = vpack.c.bf16 %v1932, %v1932
      %v1988 = vpack.c.bf16 %v1934, %v1934
      %v1989 = vpack.c.bf16 %v1937, %v1937
      %v1990 = vpack.c.bf16 %v1939, %v1939
      %v1991 = vpack.c.bf16 %v1942, %v1942
      %v1992 = vpack.c.bf16 %v1944, %v1944
      %v1993 = vpack.c.bf16 %v1947, %v1947
      %v1994 = vpack.c.bf16 %v1949, %v1949
      %v1995 = vpack.c.bf16 %v1952, %v1952
      %v1996 = vpack.c.bf16 %v1954, %v1954
      %v1997 = vpack.c.bf16 %v1957, %v1957
      %v1998 = vpack.c.bf16 %v1959, %v1959
      %v1999 = vpack.c.bf16 %v1962, %v1962
      %v2000 = vpack.c.bf16 %v1964, %v1964
      %v2001 = vpack.c.bf16 %v1967, %v1967
      %v2002 = vpack.c.bf16 %v1969, %v1969
      %vm2003 = vcmask 27648
      %2004 = vst.msk [vmem:[%s192] sm:$0xf] %vm2003, %v1971
      %2005 = vst.msk [vmem:[%s192 + $0x4] sm:$0xf] %vm2003, %v1972
      %2006 = vst.msk [vmem:[%s192 + $0x8] sm:$0xf] %vm2003, %v1973
      %2007 = vst.msk [vmem:[%s192 + $0xc] sm:$0xf] %vm2003, %v1974
      %2008 = vst.msk [vmem:[%s192 + $0x10] sm:$0xf] %vm2003, %v1975
      %2009 = vst.msk [vmem:[%s192 + $0x14] sm:$0xf] %vm2003, %v1976
      %2010 = vst.msk [vmem:[%s192 + $0x18] sm:$0xf] %vm2003, %v1977
      %2011 = vst.msk [vmem:[%s192 + $0x1c] sm:$0xf] %vm2003, %v1978
      %2012 = vst.msk [vmem:[%s192 + $0x20] sm:$0xf] %vm2003, %v1979
      %2013 = vst.msk [vmem:[%s192 + $0x24] sm:$0xf] %vm2003, %v1980
      %2014 = vst.msk [vmem:[%s192 + $0x28] sm:$0xf] %vm2003, %v1981
      %2015 = vst.msk [vmem:[%s192 + $0x2c] sm:$0xf] %vm2003, %v1982
      %2016 = vst.msk [vmem:[%s192 + $0x30] sm:$0xf] %vm2003, %v1983
      %2017 = vst.msk [vmem:[%s192 + $0x34] sm:$0xf] %vm2003, %v1984
      %2018 = vst.msk [vmem:[%s192 + $0x38] sm:$0xf] %vm2003, %v1985
      %2019 = vst.msk [vmem:[%s192 + $0x3c] sm:$0xf] %vm2003, %v1986
      %2020 = vst.msk [vmem:[%s192 + $0x40] sm:$0xf] %vm2003, %v1987
      %2021 = vst.msk [vmem:[%s192 + $0x44] sm:$0xf] %vm2003, %v1988
      %2022 = vst.msk [vmem:[%s192 + $0x48] sm:$0xf] %vm2003, %v1989
      %2023 = vst.msk [vmem:[%s192 + $0x4c] sm:$0xf] %vm2003, %v1990
      %2024 = vst.msk [vmem:[%s192 + $0x50] sm:$0xf] %vm2003, %v1991
      %2025 = vst.msk [vmem:[%s192 + $0x54] sm:$0xf] %vm2003, %v1992
      %2026 = vst.msk [vmem:[%s192 + $0x58] sm:$0xf] %vm2003, %v1993
      %2027 = vst.msk [vmem:[%s192 + $0x5c] sm:$0xf] %vm2003, %v1994
      %2028 = vst.msk [vmem:[%s192 + $0x60] sm:$0xf] %vm2003, %v1995
      %2029 = vst.msk [vmem:[%s192 + $0x64] sm:$0xf] %vm2003, %v1996
      %2030 = vst.msk [vmem:[%s192 + $0x68] sm:$0xf] %vm2003, %v1997
      %2031 = vst.msk [vmem:[%s192 + $0x6c] sm:$0xf] %vm2003, %v1998
      %2032 = vst.msk [vmem:[%s192 + $0x70] sm:$0xf] %vm2003, %v1999
      %2033 = vst.msk [vmem:[%s192 + $0x74] sm:$0xf] %vm2003, %v2000
      %2034 = vst.msk [vmem:[%s192 + $0x78] sm:$0xf] %vm2003, %v2001
      %2035 = vst.msk [vmem:[%s192 + $0x7c] sm:$0xf] %vm2003, %v2002
      %s2036 = smul.u32 32, %s19
      %p2037 = scmp.lt.s32.totalorder %s18, 1
      %s2038 = scalar_select %p2037, %s18, 1
      %p2039 = scmp.lt.s32.totalorder %s2036, 31
      %s2040 = scalar_select %p2039, %s2036, 31
      %s2041 = smul.addr %s2038, 32
      %s2042 = sadd.s32 %s2040, %s2041
      %s2043 = smul.addr %s2042, 4
      %s2044 = scalar_lea.vmem %s3, %s2043
      // Predicated region
      $region33: #{tpu_custom_call.1} parent=31 // pred_check
        %p2045 = pneg %p114
      $region34: #{tpu_custom_call.1} parent=31 // pred_check_branch
        %2047 = sbr.rel (%p2045) target = $region36
      $region35: #{tpu_custom_call.1} parent=31 // pred_region
        %s2048 = smul.u32 32, %s19
      $region36: #{tpu_custom_call.1} parent=31 // pred_fallthru
        _
    $region32: #{tpu_custom_call.1} parent=5 // pred_fallthru
      _
    %p2049 = scmp.le.s32.totalorder 2, %s9
    // Predicated region
    $region37: #{tpu_custom_call.1} parent=5 // pred_check
      %p2050 = pneg %p2049
    $region38: #{tpu_custom_call.1} parent=5 // pred_check_branch
      %2052 = sbr.rel (%p2050) target = $region40
    $region39: #{tpu_custom_call.1} parent=5 // pred_region
      %s2053 = ssub.s32 %s9, 2
      // Predicated region
      $region41: #{tpu_custom_call.1} parent=39 // pred_check
        %p2054 = pneg %p120
      $region42: #{tpu_custom_call.1} parent=39 // pred_check_branch
        %2056 = sbr.rel (%p2054) target = $region44
      $region43: #{tpu_custom_call.1} parent=39 // pred_region
        %s2057 = smul.u32 32, %s21
        %p2058 = scmp.lt.s32.totalorder %s20, 1
        %s2059 = scalar_select %p2058, %s20, 1
        %p2060 = scmp.lt.s32.totalorder %s2057, 31
        %s2061 = scalar_select %p2060, %s2057, 31
        %s2062 = smul.addr %s2059, 32
        %s2063 = sadd.s32 %s2061, %s2062
        %s2064 = smul.addr %s2063, 4
        %s2065 = scalar_lea.vmem %s3, %s2064
      $region44: #{tpu_custom_call.1} parent=39 // pred_fallthru
        _
    $region40: #{tpu_custom_call.1} parent=5 // pred_fallthru
      _
  $region6: #{tpu_custom_call.1} parent=0 // loop_footer
    %s13 = sadd.s32 1, %s9
  $region7: #{tpu_custom_call.1} parent=0 // loop_footer_branch
    %8 = sbr.rel target = $region3
  $region8: #{tpu_custom_call.1} parent=0 // loop_exit
    _

</llo_original>
